<compile_context>
chip_gen: v6e
topology: v6e:2x2x1
jax: 0.10.0
libtpu: 0.0.40
codegen_flags: <defaults>
</compile_context>

<pallas_src>
import math

import jax
import jax.numpy as jnp
from jax.experimental import pallas as pl
from jax.experimental.pallas import tpu as pltpu


def _layer_norm(x, gamma, beta, eps=1e-5):
    # x: (rows, D); gamma/beta: (1, D)   (eps matches nn.LayerNorm default)
    mean = jnp.mean(x, axis=-1, keepdims=True)
    var = jnp.mean((x - mean) ** 2, axis=-1, keepdims=True)
    inv = jax.lax.rsqrt(var + eps)
    return (x - mean) * inv * gamma + beta


def _make_encoder_kernel(S, D, H, d_k, d_ff, tq):
    """Builds the kernel with all shape constants captured statically."""

    def kernel(
        xq_ref,    # (1, tq, D)  f32   query-row tile of x (residual path)
        xbf_ref,   # (1, S,  D)  bf16  full-sequence x (Q/K/V MXU operand)
        wq_ref,    # (D, D)      bf16  W_Q, pre-scaled by 1/sqrt(d_k)
        wkv_ref,   # (D, 2D)     bf16  [W_K | W_V]
        wo_ref,    # (D, D)      bf16  W_O
        w1_ref,    # (D, d_ff)   bf16
        w2_ref,    # (d_ff, D)   bf16
        bkv_ref,   # (1, 2D)     f32   [b_k | b_v]
        b1_ref,    # (1, d_ff)   f32
        vec_ref,   # (7, D)      f32   rows: b_q(scaled), b_o, b_2, ln1_g, ln1_b, ln2_g, ln2_b
        o_ref,     # (1, tq, D)
        kv_ref,    # (S, 2D)     bf16  VMEM scratch: projected [K | V] for this batch element
    ):
        i = pl.program_id(1)

        # ---- K/V projection: once per batch element, full-width matmul. ----
        @pl.when(i == 0)
        def _project_kv():
            x_all = xbf_ref[0]                                       # (S, D) bf16
            kv = jnp.dot(x_all, wkv_ref[...],
                         preferred_element_type=jnp.float32) + bkv_ref[...]
            kv_ref[...] = kv.astype(jnp.bfloat16)

        vec = vec_ref[...]                                           # (7, D) f32
        b_q, b_o, b_2 = vec[0:1, :], vec[1:2, :], vec[2:3, :]
        g1, be1 = vec[3:4, :], vec[4:5, :]
        g2, be2 = vec[5:6, :], vec[6:7, :]

        # ---- Q projection for this query tile (scale folded into W_Q/b_q). ----
        q_start = pl.multiple_of(i * tq, tq)
        xq_b = xbf_ref[0, pl.ds(q_start, tq), :]                     # (tq, D) bf16
        q = jnp.dot(xq_b, wq_ref[...],
                    preferred_element_type=jnp.float32) + b_q        # (tq, D) f32
        q_b = q.astype(jnp.bfloat16)

        k = kv_ref[:, :D]                                            # (S, D) bf16
        v = kv_ref[:, D:]                                            # (S, D) bf16

        # ---- Per-head attention (static unrolled loop over heads). ----------
        ctx_parts = []
        for h in range(H):
            sl = slice(h * d_k, (h + 1) * d_k)
            # scores = q_h @ k_h^T : contract last dims, no materialized transpose.
            s_h = jax.lax.dot_general(
                q_b[:, sl], k[:, sl],
                dimension_numbers=(((1,), (1,)), ((), ())),
                preferred_element_type=jnp.float32)                  # (tq, S)
            m = jnp.max(s_h, axis=-1, keepdims=True)
            e = jnp.exp(s_h - m)
            denom = jnp.sum(e, axis=-1, keepdims=True)
            inv = pl.reciprocal(denom, approx=True)
            inv = inv * (2.0 - denom * inv)   # one Newton step -> near-exact softmax
            p = (e * inv).astype(jnp.bfloat16)
            ctx_parts.append(jnp.dot(p, v[:, sl],
                                     preferred_element_type=jnp.float32))
        ctx = jnp.concatenate(ctx_parts, axis=-1)                    # (tq, D) f32

        attn_out = jnp.dot(ctx.astype(jnp.bfloat16), wo_ref[...],
                           preferred_element_type=jnp.float32) + b_o

        # ---- residual + LayerNorm 1 (dropout = identity, eval mode) ---------
        x_res = xq_ref[0]                                            # (tq, D) f32
        x1 = _layer_norm(x_res + attn_out, g1, be1)

        # ---- FeedForward (bf16 MXU operands, f32 accumulation) --------------
        h1 = jnp.dot(x1.astype(jnp.bfloat16), w1_ref[...],
                     preferred_element_type=jnp.float32) + b1_ref[...]
        h1 = jnp.maximum(h1, 0.0)
        ff = jnp.dot(h1.astype(jnp.bfloat16), w2_ref[...],
                     preferred_element_type=jnp.float32) + b_2

        # ---- residual + LayerNorm 2 -----------------------------------------
        o_ref[0] = _layer_norm(x1 + ff, g2, be2).astype(o_ref.dtype)

    return kernel


def _pick_query_tile(S):
    if S <= 512:
        return S
    for cand in (512, 384, 256, 128, 64, 32, 16, 8):
        if S % cand == 0:
            return cand
    return S


def _vmem_limit_bytes():
    # Generation-aware: ~3/4 of physical VMEM (48 MiB on v7x), capped at 96 MiB
    # on the 128 MiB v5e/v6e parts.
    try:
        cap = pltpu.get_tpu_info().vmem_capacity_bytes
        return int(min(cap * 3 // 4, 96 * 1024 * 1024))
    except Exception:
        return 48 * 1024 * 1024


_FALLBACK_ERRORS = (TypeError, ValueError, NotImplementedError,
                    getattr(pltpu, "LoweringException", NotImplementedError))


def encoder_layer(x, params, n_heads, *, tq=None, compute_dtype=jnp.bfloat16):
    """x: (B, S, D) float32.  params: dict of weights pre-transposed to (in, out)."""
    B, S, D = x.shape
    assert D % n_heads == 0, "d_model must be divisible by n_heads"
    d_k = D // n_heads
    d_ff = params["w1"].shape[1]

    if tq is None:
        tq = _pick_query_tile(S)
    tq = min(tq, S)
    assert S % tq == 0, "S must be divisible by the query tile size"
    assert tq == S or tq % 8 == 0, "partial query tiles must be sublane (8) aligned"
    n_qt = S // tq

    scale = 1.0 / math.sqrt(d_k)

    # ---- one-time (outside-kernel) parameter / input repacking --------------
    wq = (params["wq"] * scale).astype(compute_dtype)                   # (D, D)
    wkv = jnp.concatenate([params["wk"], params["wv"]], axis=1).astype(compute_dtype)  # (D, 2D)
    wo = params["wo"].astype(compute_dtype)                             # (D, D)
    w1 = params["w1"].astype(compute_dtype)                             # (D, d_ff)
    w2 = params["w2"].astype(compute_dtype)                             # (d_ff, D)
    bkv = jnp.concatenate([params["bk"], params["bv"]], axis=1)         # (1, 2D) f32
    b1 = params["b1"]                                                   # (1, d_ff) f32
    vec = jnp.concatenate([params["bq"] * scale, params["bo"], params["b2"],
                           params["ln1_g"], params["ln1_b"],
                           params["ln2_g"], params["ln2_b"]], axis=0)   # (7, D) f32
    x_bf = x.astype(compute_dtype)                                      # (B, S, D) bf16

    kernel = _make_encoder_kernel(S, D, n_heads, d_k, d_ff, tq)

    grid = (B, n_qt)
    xq_map = lambda b, i: (b, i, 0)
    xkv_map = lambda b, i: (b, 0, 0)
    cmap = lambda b, i: (0, 0)

    # Weights streamed once; x read once as bf16 per batch element plus the
    # f32 residual tiles; output written once.
    cost = pl.CostEstimate(
        flops=int(2 * B * S * D * 3 * D          # Q/K/V projections
                  + 4 * B * S * S * D            # QK^T + PV
                  + 2 * B * S * D * D            # W_O
                  + 4 * B * S * D * d_ff),       # FFN
        transcendentals=int(B * n_heads * S * S + B * S * (n_heads + 4)),
        bytes_accessed=int((wq.size + wkv.size + wo.size + w1.size + w2.size) * 2
                           + (bkv.size + b1.size + vec.size) * 4
                           + B * S * D * 2       # bf16 x
                           + B * S * D * 4       # f32 residual tiles
                           + B * S * D * 4),     # output
    )

    def build_in_specs(single_buffer_weights):
        pm = pl.Buffered(1) if single_buffer_weights else None

        def const_spec(shape):
            if pm is None:
                return pl.BlockSpec(shape, cmap)
            return pl.BlockSpec(shape, cmap, pipeline_mode=pm)

        return [
            pl.BlockSpec((1, tq, D), xq_map),    # x (f32 residual tile)
            pl.BlockSpec((1, S, D), xkv_map),    # x (bf16 full sequence)
            const_spec((D, D)),                  # W_Q (scaled)
            const_spec((D, 2 * D)),              # [W_K | W_V]
            const_spec((D, D)),                  # W_O
            const_spec((D, d_ff)),               # W_1
            const_spec((d_ff, D)),               # W_2
            const_spec((1, 2 * D)),              # [b_k | b_v]
            const_spec((1, d_ff)),               # b_1
            const_spec((7, D)),                  # packed b_q, b_o, b_2, LN params
        ]

    def call(single_buffer_weights):
        return pl.pallas_call(
            kernel,
            out_shape=jax.ShapeDtypeStruct((B, S, D), x.dtype),
            grid_spec=pltpu.PrefetchScalarGridSpec(
                num_scalar_prefetch=0,
                grid=grid,
                in_specs=build_in_specs(single_buffer_weights),
                out_specs=pl.BlockSpec((1, tq, D), xq_map),
                scratch_shapes=[pltpu.VMEM((S, 2 * D), compute_dtype)],
            ),
            compiler_params=pltpu.CompilerParams(
                # batch axis parallel (megacore); query-tile axis must stay
                # "arbitrary": the K/V scratch is filled at i == 0 and reused.
                dimension_semantics=("parallel", "arbitrary"),
                vmem_limit_bytes=_vmem_limit_bytes(),
            ),
            cost_estimate=cost,
        )(x, x_bf, wq, wkv, wo, w1, w2, bkv, b1, vec)

    if hasattr(pl, "Buffered"):
        try:
            # Grid-invariant weights never change block index -> single buffer
            # halves their VMEM footprint (matters most on v7x's 64 MiB VMEM).
            return call(True)
        except _FALLBACK_ERRORS:
            # pipeline_mode / single-buffering unsupported on this build; any
            # genuine kernel error will still surface from the call below.
            pass
    return call(False)


def reference_encoder_layer(x, params, n_heads):
    """Pure-JAX f32 reference for correctness checking."""
    B, S, D = x.shape
    d_k = D // n_heads

    def ln(v, g, b, eps=1e-5):
        m = jnp.mean(v, axis=-1, keepdims=True)
        var = jnp.mean((v - m) ** 2, axis=-1, keepdims=True)
        return (v - m) / jnp.sqrt(var + eps) * g + b

    q = x @ params["wq"] + params["bq"]
    k = x @ params["wk"] + params["bk"]
    v = x @ params["wv"] + params["bv"]

    def split(t):  # (B,S,D) -> (B,H,S,dk)
        return t.reshape(B, S, n_heads, d_k).transpose(0, 2, 1, 3)

    qh, kh, vh = split(q), split(k), split(v)
    scores = jnp.einsum("bhqd,bhkd->bhqk", qh, kh) / jnp.sqrt(jnp.float32(d_k))
    attn = jax.nn.softmax(scores, axis=-1)
    out = jnp.einsum("bhqk,bhkd->bhqd", attn, vh)
    out = out.transpose(0, 2, 1, 3).reshape(B, S, D)
    attn_out = out @ params["wo"] + params["bo"]

    x1 = ln(x + attn_out, params["ln1_g"], params["ln1_b"])
    ff = jnp.maximum(x1 @ params["w1"] + params["b1"], 0.0) @ params["w2"] + params["b2"]
    return ln(x1 + ff, params["ln2_g"], params["ln2_b"])


def init_params(key, d_model, d_ff):
    """Deterministic init mirroring nn.Linear / nn.LayerNorm shapes.

    nn.Linear weight is (out, in); we store the transpose (in, out) so the
    kernel computes x @ W + b.  Biases / LayerNorm params stored as (1, dim).
    """
    keys = jax.random.split(key, 12)
    s = 0.02

    def w(k, shape):
        return jax.random.normal(k, shape, dtype=jnp.float32) * s

    return {
        "wq": w(keys[0], (d_model, d_model)), "bq": w(keys[1], (1, d_model)),
        "wk": w(keys[2], (d_model, d_model)), "bk": w(keys[3], (1, d_model)),
        "wv": w(keys[4], (d_model, d_model)), "bv": w(keys[5], (1, d_model)),
        "wo": w(keys[6], (d_model, d_model)), "bo": w(keys[7], (1, d_model)),
        "w1": w(keys[8], (d_model, d_ff)),    "b1": w(keys[9], (1, d_ff)),
        "w2": w(keys[10], (d_ff, d_model)),   "b2": w(keys[11], (1, d_model)),
        "ln1_g": jnp.ones((1, d_model), jnp.float32),
        "ln1_b": jnp.zeros((1, d_model), jnp.float32),
        "ln2_g": jnp.ones((1, d_model), jnp.float32),
        "ln2_b": jnp.zeros((1, d_model), jnp.float32),
    }


if __name__ == "__main__":
    B, S, D, H, FF = 2, 8, 32, 4, 64

    key = jax.random.PRNGKey(0)
    kx, kp = jax.random.split(key)
    x = jax.random.normal(kx, (B, S, D), dtype=jnp.float32)
    params = init_params(kp, D, FF)

    out = encoder_layer(x, params, n_heads=H)
    out = jax.block_until_ready(out)

    ref = reference_encoder_layer(x, params, n_heads=H)
    assert out.shape == (B, S, D)
    max_err = float(jnp.max(jnp.abs(out - ref)))
    # bf16 MXU operands (f32 accumulation) => looser tolerance than pure f32.
    assert jnp.allclose(out, ref, atol=1e-2, rtol=1e-2), (
        f"mismatch vs reference (max abs err {max_err})")
    print("KERNEL_OK")
</pallas_src>

<mosaic_0001>
module attributes {stable_mosaic.version = 11 : i64} {
  func.func @kernel(%arg0: i32, %arg1: i32, %arg2: memref<1x8x32xf32, #tpu.memory_space<vmem>>, %arg3: memref<1x8x32xbf16, #tpu.memory_space<vmem>>, %arg4: memref<32x32xbf16, #tpu.memory_space<vmem>>, %arg5: memref<32x64xbf16, #tpu.memory_space<vmem>>, %arg6: memref<32x32xbf16, #tpu.memory_space<vmem>>, %arg7: memref<32x64xbf16, #tpu.memory_space<vmem>>, %arg8: memref<64x32xbf16, #tpu.memory_space<vmem>>, %arg9: memref<1x64xf32, #tpu.memory_space<vmem>>, %arg10: memref<1x64xf32, #tpu.memory_space<vmem>>, %arg11: memref<7x32xf32, #tpu.memory_space<vmem>>, %arg12: memref<1x8x32xf32, #tpu.memory_space<vmem>>, %arg13: memref<8x64xbf16, #tpu.memory_space<vmem>>) attributes {dimension_semantics = [#tpu.dimension_semantics<parallel>, #tpu.dimension_semantics<arbitrary>], iteration_bounds = array<i64: 2, 1>, scalar_prefetch = 0 : i64, scratch_operands = 1 : i64, tpu.core_type = #tpu.core_type<tc>, window_params = [{transform_indices = @transform_0, window_bounds = array<i64: 1, 8, 32>}, {transform_indices = @transform_1, window_bounds = array<i64: 1, 8, 32>}, {pipeline_mode = #tpu.pipeline_mode<synchronous>, transform_indices = @transform_2, window_bounds = array<i64: 32, 32>}, {pipeline_mode = #tpu.pipeline_mode<synchronous>, transform_indices = @transform_3, window_bounds = array<i64: 32, 64>}, {pipeline_mode = #tpu.pipeline_mode<synchronous>, transform_indices = @transform_4, window_bounds = array<i64: 32, 32>}, {pipeline_mode = #tpu.pipeline_mode<synchronous>, transform_indices = @transform_5, window_bounds = array<i64: 32, 64>}, {pipeline_mode = #tpu.pipeline_mode<synchronous>, transform_indices = @transform_6, window_bounds = array<i64: 64, 32>}, {pipeline_mode = #tpu.pipeline_mode<synchronous>, transform_indices = @transform_7, window_bounds = array<i64: 1, 64>}, {pipeline_mode = #tpu.pipeline_mode<synchronous>, transform_indices = @transform_8, window_bounds = array<i64: 1, 64>}, {pipeline_mode = #tpu.pipeline_mode<synchronous>, transform_indices = @transform_9, window_bounds = array<i64: 7, 32>}, {transform_indices = @transform_10, window_bounds = array<i64: 1, 8, 32>}]} {
    %c0_i32 = arith.constant 0 : i32
    %0 = arith.cmpi eq, %arg1, %c0_i32 : i32
    %1 = arith.extui %0 : i1 to i32
    %c0_i32_0 = arith.constant 0 : i32
    %2 = arith.cmpi ne, %1, %c0_i32_0 : i32
    scf.if %2 {
      %c0_57 = arith.constant 0 : index
      %c0_58 = arith.constant 0 : index
      %c0_59 = arith.constant 0 : index
      %173 = vector.load %arg3[%c0_57, %c0_58, %c0_59] : memref<1x8x32xbf16, #tpu.memory_space<vmem>>, vector<1x8x32xbf16>
      %174 = vector.shape_cast %173 : vector<1x8x32xbf16> to vector<8x32xbf16>
      %c0_60 = arith.constant 0 : index
      %c0_61 = arith.constant 0 : index
      %175 = vector.load %arg5[%c0_60, %c0_61] : memref<32x64xbf16, #tpu.memory_space<vmem>>, vector<32x64xbf16>
      %cst_62 = arith.constant dense<0.000000e+00> : vector<8x64xf32>
      %176 = tpu.matmul %174, %175, %cst_62 {dimension_numbers = #tpu.dot_dimension_numbers<[1], [0], [0], [1], [0, 0, 1, 1], [], []>} : vector<8x32xbf16>, vector<32x64xbf16>, vector<8x64xf32> -> vector<8x64xf32>
      %c0_63 = arith.constant 0 : index
      %c0_64 = arith.constant 0 : index
      %177 = vector.load %arg9[%c0_63, %c0_64] : memref<1x64xf32, #tpu.memory_space<vmem>>, vector<1x64xf32>
      %178 = vector.broadcast %177 : vector<1x64xf32> to vector<8x64xf32>
      %179 = arith.addf %176, %178 : vector<8x64xf32>
      %180 = arith.truncf %179 : vector<8x64xf32> to vector<8x64xbf16>
      %c0_65 = arith.constant 0 : index
      %c0_66 = arith.constant 0 : index
      %181 = vector.load %arg13[%c0_65, %c0_66] : memref<8x64xbf16, #tpu.memory_space<vmem>>, vector<8x64xbf16>
      tpu.vector_store %arg13[%c0_65, %c0_66], %180 {strides = array<i32>} : memref<8x64xbf16, #tpu.memory_space<vmem>>, vector<8x64xbf16>,
    } else {
    }
    %c0 = arith.constant 0 : index
    %c0_1 = arith.constant 0 : index
    %3 = vector.load %arg11[%c0, %c0_1] : memref<7x32xf32, #tpu.memory_space<vmem>>, vector<7x32xf32>
    %4 = vector.extract_strided_slice %3 {offsets = [0, 0], sizes = [1, 32], strides = [1, 1]} : vector<7x32xf32> to vector<1x32xf32>
    %5 = vector.extract_strided_slice %3 {offsets = [1, 0], sizes = [1, 32], strides = [1, 1]} : vector<7x32xf32> to vector<1x32xf32>
    %6 = vector.extract_strided_slice %3 {offsets = [2, 0], sizes = [1, 32], strides = [1, 1]} : vector<7x32xf32> to vector<1x32xf32>
    %7 = vector.extract_strided_slice %3 {offsets = [3, 0], sizes = [1, 32], strides = [1, 1]} : vector<7x32xf32> to vector<1x32xf32>
    %8 = vector.extract_strided_slice %3 {offsets = [4, 0], sizes = [1, 32], strides = [1, 1]} : vector<7x32xf32> to vector<1x32xf32>
    %9 = vector.extract_strided_slice %3 {offsets = [5, 0], sizes = [1, 32], strides = [1, 1]} : vector<7x32xf32> to vector<1x32xf32>
    %10 = vector.extract_strided_slice %3 {offsets = [6, 0], sizes = [1, 32], strides = [1, 1]} : vector<7x32xf32> to vector<1x32xf32>
    %c8_i32 = arith.constant 8 : i32
    %11 = arith.muli %arg1, %c8_i32 : i32
    %12 = tpu.assume_multiple %11, 8 : i32
    %c0_2 = arith.constant 0 : index
    %13 = arith.index_cast %12 : i32 to index
    %c0_3 = arith.constant 0 : index
    %14 = vector.load %arg3[%c0_2, %13, %c0_3] : memref<1x8x32xbf16, #tpu.memory_space<vmem>>, vector<1x8x32xbf16>
    %15 = vector.shape_cast %14 : vector<1x8x32xbf16> to vector<8x32xbf16>
    %c0_4 = arith.constant 0 : index
    %c0_5 = arith.constant 0 : index
    %16 = vector.load %arg4[%c0_4, %c0_5] : memref<32x32xbf16, #tpu.memory_space<vmem>>, vector<32x32xbf16>
    %cst = arith.constant dense<0.000000e+00> : vector<8x32xf32>
    %17 = tpu.matmul %15, %16, %cst {dimension_numbers = #tpu.dot_dimension_numbers<[1], [0], [0], [1], [0, 0, 1, 1], [], []>} : vector<8x32xbf16>, vector<32x32xbf16>, vector<8x32xf32> -> vector<8x32xf32>
    %18 = vector.broadcast %4 : vector<1x32xf32> to vector<8x32xf32>
    %19 = arith.addf %17, %18 : vector<8x32xf32>
    %20 = arith.truncf %19 : vector<8x32xf32> to vector<8x32xbf16>
    %c0_6 = arith.constant 0 : index
    %c0_7 = arith.constant 0 : index
    %21 = vector.load %arg13[%c0_6, %c0_7] : memref<8x64xbf16, #tpu.memory_space<vmem>>, vector<8x32xbf16>
    %c0_8 = arith.constant 0 : index
    %c32 = arith.constant 32 : index
    %22 = vector.load %arg13[%c0_8, %c32] : memref<8x64xbf16, #tpu.memory_space<vmem>>, vector<8x32xbf16>
    %23 = vector.extract_strided_slice %20 {offsets = [0, 0], sizes = [8, 8], strides = [1, 1]} : vector<8x32xbf16> to vector<8x8xbf16>
    %24 = vector.extract_strided_slice %21 {offsets = [0, 0], sizes = [8, 8], strides = [1, 1]} : vector<8x32xbf16> to vector<8x8xbf16>
    %cst_9 = arith.constant dense<0.000000e+00> : vector<8x8xf32>
    %25 = tpu.matmul %23, %24, %cst_9 {dimension_numbers = #tpu.dot_dimension_numbers<[1], [1], [0], [0], [0, 0, 1, 0], [], []>} : vector<8x8xbf16>, vector<8x8xbf16>, vector<8x8xf32> -> vector<8x8xf32>
    %cst_10 = arith.constant dense<0xFF800000> : vector<8xf32>
    %26 = vector.multi_reduction <maximumf>, %25, %cst_10 [1] : vector<8x8xf32> to vector<8xf32>
    %27 = vector.shape_cast %26 : vector<8xf32> to vector<8x1xf32>
    %28 = vector.broadcast %27 : vector<8x1xf32> to vector<8x8xf32>
    %29 = arith.subf %25, %28 : vector<8x8xf32>
    %30 = math.exp %29 : vector<8x8xf32>
    %cst_11 = arith.constant dense<0.000000e+00> : vector<8xf32>
    %31 = vector.multi_reduction <add>, %30, %cst_11 [1] : vector<8x8xf32> to vector<8xf32>
    %32 = vector.shape_cast %31 : vector<8xf32> to vector<8x1xf32>
    %33 = tpu.reciprocal %32 {approx = true} : vector<8x1xf32> -> vector<8x1xf32>
    %34 = arith.mulf %32, %33 : vector<8x1xf32>
    %cst_12 = arith.constant 2.000000e+00 : f32
    %35 = vector.broadcast %cst_12 : f32 to vector<8x1xf32>
    %36 = arith.subf %35, %34 : vector<8x1xf32>
    %37 = arith.mulf %33, %36 : vector<8x1xf32>
    %38 = vector.broadcast %37 : vector<8x1xf32> to vector<8x8xf32>
    %39 = arith.mulf %30, %38 : vector<8x8xf32>
    %40 = arith.truncf %39 : vector<8x8xf32> to vector<8x8xbf16>
    %41 = vector.extract_strided_slice %22 {offsets = [0, 0], sizes = [8, 8], strides = [1, 1]} : vector<8x32xbf16> to vector<8x8xbf16>
    %cst_13 = arith.constant dense<0.000000e+00> : vector<8x8xf32>
    %42 = tpu.matmul %40, %41, %cst_13 {dimension_numbers = #tpu.dot_dimension_numbers<[1], [0], [0], [1], [0, 0, 1, 1], [], []>} : vector<8x8xbf16>, vector<8x8xbf16>, vector<8x8xf32> -> vector<8x8xf32>
    %43 = vector.extract_strided_slice %20 {offsets = [0, 8], sizes = [8, 8], strides = [1, 1]} : vector<8x32xbf16> to vector<8x8xbf16>
    %44 = vector.extract_strided_slice %21 {offsets = [0, 8], sizes = [8, 8], strides = [1, 1]} : vector<8x32xbf16> to vector<8x8xbf16>
    %cst_14 = arith.constant dense<0.000000e+00> : vector<8x8xf32>
    %45 = tpu.matmul %43, %44, %cst_14 {dimension_numbers = #tpu.dot_dimension_numbers<[1], [1], [0], [0], [0, 0, 1, 0], [], []>} : vector<8x8xbf16>, vector<8x8xbf16>, vector<8x8xf32> -> vector<8x8xf32>
    %cst_15 = arith.constant dense<0xFF800000> : vector<8xf32>
    %46 = vector.multi_reduction <maximumf>, %45, %cst_15 [1] : vector<8x8xf32> to vector<8xf32>
    %47 = vector.shape_cast %46 : vector<8xf32> to vector<8x1xf32>
    %48 = vector.broadcast %47 : vector<8x1xf32> to vector<8x8xf32>
    %49 = arith.subf %45, %48 : vector<8x8xf32>
    %50 = math.exp %49 : vector<8x8xf32>
    %cst_16 = arith.constant dense<0.000000e+00> : vector<8xf32>
    %51 = vector.multi_reduction <add>, %50, %cst_16 [1] : vector<8x8xf32> to vector<8xf32>
    %52 = vector.shape_cast %51 : vector<8xf32> to vector<8x1xf32>
    %53 = tpu.reciprocal %52 {approx = true} : vector<8x1xf32> -> vector<8x1xf32>
    %54 = arith.mulf %52, %53 : vector<8x1xf32>
    %cst_17 = arith.constant 2.000000e+00 : f32
    %55 = vector.broadcast %cst_17 : f32 to vector<8x1xf32>
    %56 = arith.subf %55, %54 : vector<8x1xf32>
    %57 = arith.mulf %53, %56 : vector<8x1xf32>
    %58 = vector.broadcast %57 : vector<8x1xf32> to vector<8x8xf32>
    %59 = arith.mulf %50, %58 : vector<8x8xf32>
    %60 = arith.truncf %59 : vector<8x8xf32> to vector<8x8xbf16>
    %61 = vector.extract_strided_slice %22 {offsets = [0, 8], sizes = [8, 8], strides = [1, 1]} : vector<8x32xbf16> to vector<8x8xbf16>
    %cst_18 = arith.constant dense<0.000000e+00> : vector<8x8xf32>
    %62 = tpu.matmul %60, %61, %cst_18 {dimension_numbers = #tpu.dot_dimension_numbers<[1], [0], [0], [1], [0, 0, 1, 1], [], []>} : vector<8x8xbf16>, vector<8x8xbf16>, vector<8x8xf32> -> vector<8x8xf32>
    %63 = vector.extract_strided_slice %20 {offsets = [0, 16], sizes = [8, 8], strides = [1, 1]} : vector<8x32xbf16> to vector<8x8xbf16>
    %64 = vector.extract_strided_slice %21 {offsets = [0, 16], sizes = [8, 8], strides = [1, 1]} : vector<8x32xbf16> to vector<8x8xbf16>
    %cst_19 = arith.constant dense<0.000000e+00> : vector<8x8xf32>
    %65 = tpu.matmul %63, %64, %cst_19 {dimension_numbers = #tpu.dot_dimension_numbers<[1], [1], [0], [0], [0, 0, 1, 0], [], []>} : vector<8x8xbf16>, vector<8x8xbf16>, vector<8x8xf32> -> vector<8x8xf32>
    %cst_20 = arith.constant dense<0xFF800000> : vector<8xf32>
    %66 = vector.multi_reduction <maximumf>, %65, %cst_20 [1] : vector<8x8xf32> to vector<8xf32>
    %67 = vector.shape_cast %66 : vector<8xf32> to vector<8x1xf32>
    %68 = vector.broadcast %67 : vector<8x1xf32> to vector<8x8xf32>
    %69 = arith.subf %65, %68 : vector<8x8xf32>
    %70 = math.exp %69 : vector<8x8xf32>
    %cst_21 = arith.constant dense<0.000000e+00> : vector<8xf32>
    %71 = vector.multi_reduction <add>, %70, %cst_21 [1] : vector<8x8xf32> to vector<8xf32>
    %72 = vector.shape_cast %71 : vector<8xf32> to vector<8x1xf32>
    %73 = tpu.reciprocal %72 {approx = true} : vector<8x1xf32> -> vector<8x1xf32>
    %74 = arith.mulf %72, %73 : vector<8x1xf32>
    %cst_22 = arith.constant 2.000000e+00 : f32
    %75 = vector.broadcast %cst_22 : f32 to vector<8x1xf32>
    %76 = arith.subf %75, %74 : vector<8x1xf32>
    %77 = arith.mulf %73, %76 : vector<8x1xf32>
    %78 = vector.broadcast %77 : vector<8x1xf32> to vector<8x8xf32>
    %79 = arith.mulf %70, %78 : vector<8x8xf32>
    %80 = arith.truncf %79 : vector<8x8xf32> to vector<8x8xbf16>
    %81 = vector.extract_strided_slice %22 {offsets = [0, 16], sizes = [8, 8], strides = [1, 1]} : vector<8x32xbf16> to vector<8x8xbf16>
    %cst_23 = arith.constant dense<0.000000e+00> : vector<8x8xf32>
    %82 = tpu.matmul %80, %81, %cst_23 {dimension_numbers = #tpu.dot_dimension_numbers<[1], [0], [0], [1], [0, 0, 1, 1], [], []>} : vector<8x8xbf16>, vector<8x8xbf16>, vector<8x8xf32> -> vector<8x8xf32>
    %83 = vector.extract_strided_slice %20 {offsets = [0, 24], sizes = [8, 8], strides = [1, 1]} : vector<8x32xbf16> to vector<8x8xbf16>
    %84 = vector.extract_strided_slice %21 {offsets = [0, 24], sizes = [8, 8], strides = [1, 1]} : vector<8x32xbf16> to vector<8x8xbf16>
    %cst_24 = arith.constant dense<0.000000e+00> : vector<8x8xf32>
    %85 = tpu.matmul %83, %84, %cst_24 {dimension_numbers = #tpu.dot_dimension_numbers<[1], [1], [0], [0], [0, 0, 1, 0], [], []>} : vector<8x8xbf16>, vector<8x8xbf16>, vector<8x8xf32> -> vector<8x8xf32>
    %cst_25 = arith.constant dense<0xFF800000> : vector<8xf32>
    %86 = vector.multi_reduction <maximumf>, %85, %cst_25 [1] : vector<8x8xf32> to vector<8xf32>
    %87 = vector.shape_cast %86 : vector<8xf32> to vector<8x1xf32>
    %88 = vector.broadcast %87 : vector<8x1xf32> to vector<8x8xf32>
    %89 = arith.subf %85, %88 : vector<8x8xf32>
    %90 = math.exp %89 : vector<8x8xf32>
    %cst_26 = arith.constant dense<0.000000e+00> : vector<8xf32>
    %91 = vector.multi_reduction <add>, %90, %cst_26 [1] : vector<8x8xf32> to vector<8xf32>
    %92 = vector.shape_cast %91 : vector<8xf32> to vector<8x1xf32>
    %93 = tpu.reciprocal %92 {approx = true} : vector<8x1xf32> -> vector<8x1xf32>
    %94 = arith.mulf %92, %93 : vector<8x1xf32>
    %cst_27 = arith.constant 2.000000e+00 : f32
    %95 = vector.broadcast %cst_27 : f32 to vector<8x1xf32>
    %96 = arith.subf %95, %94 : vector<8x1xf32>
    %97 = arith.mulf %93, %96 : vector<8x1xf32>
    %98 = vector.broadcast %97 : vector<8x1xf32> to vector<8x8xf32>
    %99 = arith.mulf %90, %98 : vector<8x8xf32>
    %100 = arith.truncf %99 : vector<8x8xf32> to vector<8x8xbf16>
    %101 = vector.extract_strided_slice %22 {offsets = [0, 24], sizes = [8, 8], strides = [1, 1]} : vector<8x32xbf16> to vector<8x8xbf16>
    %cst_28 = arith.constant dense<0.000000e+00> : vector<8x8xf32>
    %102 = tpu.matmul %100, %101, %cst_28 {dimension_numbers = #tpu.dot_dimension_numbers<[1], [0], [0], [1], [0, 0, 1, 1], [], []>} : vector<8x8xbf16>, vector<8x8xbf16>, vector<8x8xf32> -> vector<8x8xf32>
    %103 = tpu.concatenate %42, %62, %82, %102 in 1 : vector<8x8xf32>, vector<8x8xf32>, vector<8x8xf32>, vector<8x8xf32> -> vector<8x32xf32>
    %104 = arith.truncf %103 : vector<8x32xf32> to vector<8x32xbf16>
    %c0_29 = arith.constant 0 : index
    %c0_30 = arith.constant 0 : index
    %105 = vector.load %arg6[%c0_29, %c0_30] : memref<32x32xbf16, #tpu.memory_space<vmem>>, vector<32x32xbf16>
    %cst_31 = arith.constant dense<0.000000e+00> : vector<8x32xf32>
    %106 = tpu.matmul %104, %105, %cst_31 {dimension_numbers = #tpu.dot_dimension_numbers<[1], [0], [0], [1], [0, 0, 1, 1], [], []>} : vector<8x32xbf16>, vector<32x32xbf16>, vector<8x32xf32> -> vector<8x32xf32>
    %107 = vector.broadcast %5 : vector<1x32xf32> to vector<8x32xf32>
    %108 = arith.addf %106, %107 : vector<8x32xf32>
    %c0_32 = arith.constant 0 : index
    %c0_33 = arith.constant 0 : index
    %c0_34 = arith.constant 0 : index
    %109 = vector.load %arg2[%c0_32, %c0_33, %c0_34] : memref<1x8x32xf32, #tpu.memory_space<vmem>>, vector<1x8x32xf32>
    %110 = vector.shape_cast %109 : vector<1x8x32xf32> to vector<8x32xf32>
    %111 = arith.addf %110, %108 : vector<8x32xf32>
    %cst_35 = arith.constant dense<0.000000e+00> : vector<8xf32>
    %112 = vector.multi_reduction <add>, %111, %cst_35 [1] : vector<8x32xf32> to vector<8xf32>
    %113 = vector.shape_cast %112 : vector<8xf32> to vector<8x1xf32>
    %cst_36 = arith.constant 3.200000e+01 : f32
    %114 = vector.broadcast %cst_36 : f32 to vector<8x1xf32>
    %115 = arith.divf %113, %114 : vector<8x1xf32>
    %116 = vector.broadcast %115 : vector<8x1xf32> to vector<8x32xf32>
    %117 = arith.subf %111, %116 : vector<8x32xf32>
    %118 = arith.mulf %117, %117 : vector<8x32xf32>
    %cst_37 = arith.constant dense<0.000000e+00> : vector<8xf32>
    %119 = vector.multi_reduction <add>, %118, %cst_37 [1] : vector<8x32xf32> to vector<8xf32>
    %120 = vector.shape_cast %119 : vector<8xf32> to vector<8x1xf32>
    %cst_38 = arith.constant 3.200000e+01 : f32
    %121 = vector.broadcast %cst_38 : f32 to vector<8x1xf32>
    %122 = arith.divf %120, %121 : vector<8x1xf32>
    %cst_39 = arith.constant 9.99999974E-6 : f32
    %123 = vector.broadcast %cst_39 : f32 to vector<8x1xf32>
    %124 = arith.addf %122, %123 : vector<8x1xf32>
    %125 = math.rsqrt %124 : vector<8x1xf32>
    %126 = vector.broadcast %115 : vector<8x1xf32> to vector<8x32xf32>
    %127 = arith.subf %111, %126 : vector<8x32xf32>
    %128 = vector.broadcast %125 : vector<8x1xf32> to vector<8x32xf32>
    %129 = arith.mulf %127, %128 : vector<8x32xf32>
    %130 = vector.broadcast %7 : vector<1x32xf32> to vector<8x32xf32>
    %131 = arith.mulf %129, %130 : vector<8x32xf32>
    %132 = vector.broadcast %8 : vector<1x32xf32> to vector<8x32xf32>
    %133 = arith.addf %131, %132 : vector<8x32xf32>
    %134 = arith.truncf %133 : vector<8x32xf32> to vector<8x32xbf16>
    %c0_40 = arith.constant 0 : index
    %c0_41 = arith.constant 0 : index
    %135 = vector.load %arg7[%c0_40, %c0_41] : memref<32x64xbf16, #tpu.memory_space<vmem>>, vector<32x64xbf16>
    %cst_42 = arith.constant dense<0.000000e+00> : vector<8x64xf32>
    %136 = tpu.matmul %134, %135, %cst_42 {dimension_numbers = #tpu.dot_dimension_numbers<[1], [0], [0], [1], [0, 0, 1, 1], [], []>} : vector<8x32xbf16>, vector<32x64xbf16>, vector<8x64xf32> -> vector<8x64xf32>
    %c0_43 = arith.constant 0 : index
    %c0_44 = arith.constant 0 : index
    %137 = vector.load %arg10[%c0_43, %c0_44] : memref<1x64xf32, #tpu.memory_space<vmem>>, vector<1x64xf32>
    %138 = vector.broadcast %137 : vector<1x64xf32> to vector<8x64xf32>
    %139 = arith.addf %136, %138 : vector<8x64xf32>
    %cst_45 = arith.constant 0.000000e+00 : f32
    %140 = vector.broadcast %cst_45 : f32 to vector<8x64xf32>
    %141 = arith.maximumf %139, %140 : vector<8x64xf32>
    %142 = arith.truncf %141 : vector<8x64xf32> to vector<8x64xbf16>
    %c0_46 = arith.constant 0 : index
    %c0_47 = arith.constant 0 : index
    %143 = vector.load %arg8[%c0_46, %c0_47] : memref<64x32xbf16, #tpu.memory_space<vmem>>, vector<64x32xbf16>
    %cst_48 = arith.constant dense<0.000000e+00> : vector<8x32xf32>
    %144 = tpu.matmul %142, %143, %cst_48 {dimension_numbers = #tpu.dot_dimension_numbers<[1], [0], [0], [1], [0, 0, 1, 1], [], []>} : vector<8x64xbf16>, vector<64x32xbf16>, vector<8x32xf32> -> vector<8x32xf32>
    %145 = vector.broadcast %6 : vector<1x32xf32> to vector<8x32xf32>
    %146 = arith.addf %144, %145 : vector<8x32xf32>
    %147 = arith.addf %133, %146 : vector<8x32xf32>
    %cst_49 = arith.constant dense<0.000000e+00> : vector<8xf32>
    %148 = vector.multi_reduction <add>, %147, %cst_49 [1] : vector<8x32xf32> to vector<8xf32>
    %149 = vector.shape_cast %148 : vector<8xf32> to vector<8x1xf32>
    %cst_50 = arith.constant 3.200000e+01 : f32
    %150 = vector.broadcast %cst_50 : f32 to vector<8x1xf32>
    %151 = arith.divf %149, %150 : vector<8x1xf32>
    %152 = vector.broadcast %151 : vector<8x1xf32> to vector<8x32xf32>
    %153 = arith.subf %147, %152 : vector<8x32xf32>
    %154 = arith.mulf %153, %153 : vector<8x32xf32>
    %cst_51 = arith.constant dense<0.000000e+00> : vector<8xf32>
    %155 = vector.multi_reduction <add>, %154, %cst_51 [1] : vector<8x32xf32> to vector<8xf32>
    %156 = vector.shape_cast %155 : vector<8xf32> to vector<8x1xf32>
    %cst_52 = arith.constant 3.200000e+01 : f32
    %157 = vector.broadcast %cst_52 : f32 to vector<8x1xf32>
    %158 = arith.divf %156, %157 : vector<8x1xf32>
    %cst_53 = arith.constant 9.99999974E-6 : f32
    %159 = vector.broadcast %cst_53 : f32 to vector<8x1xf32>
    %160 = arith.addf %158, %159 : vector<8x1xf32>
    %161 = math.rsqrt %160 : vector<8x1xf32>
    %162 = vector.broadcast %151 : vector<8x1xf32> to vector<8x32xf32>
    %163 = arith.subf %147, %162 : vector<8x32xf32>
    %164 = vector.broadcast %161 : vector<8x1xf32> to vector<8x32xf32>
    %165 = arith.mulf %163, %164 : vector<8x32xf32>
    %166 = vector.broadcast %9 : vector<1x32xf32> to vector<8x32xf32>
    %167 = arith.mulf %165, %166 : vector<8x32xf32>
    %168 = vector.broadcast %10 : vector<1x32xf32> to vector<8x32xf32>
    %169 = arith.addf %167, %168 : vector<8x32xf32>
    %c0_54 = arith.constant 0 : index
    %c0_55 = arith.constant 0 : index
    %c0_56 = arith.constant 0 : index
    %170 = vector.load %arg12[%c0_54, %c0_55, %c0_56] : memref<1x8x32xf32, #tpu.memory_space<vmem>>, vector<1x8x32xf32>
    %171 = vector.shape_cast %170 : vector<1x8x32xf32> to vector<8x32xf32>
    %172 = vector.shape_cast %169 : vector<8x32xf32> to vector<1x8x32xf32>
    tpu.vector_store %arg12[%c0_54, %c0_55, %c0_56], %172 {strides = array<i32>} : memref<1x8x32xf32, #tpu.memory_space<vmem>>, vector<1x8x32xf32>,
    return
  }
  func.func @transform_0(%arg0: i32, %arg1: i32) -> (i32, i32, i32) {
    %c0_i32 = arith.constant 0 : i32
    %c0_i32_0 = arith.constant 0 : i32
    return %arg0, %arg1, %c0_i32 : i32, i32, i32
  }
  func.func @transform_1(%arg0: i32, %arg1: i32) -> (i32, i32, i32) {
    %c0_i32 = arith.constant 0 : i32
    %c0_i32_0 = arith.constant 0 : i32
    %c0_i32_1 = arith.constant 0 : i32
    return %arg0, %c0_i32, %c0_i32_0 : i32, i32, i32
  }
  func.func @transform_2(%arg0: i32, %arg1: i32) -> (i32, i32) {
    %c0_i32 = arith.constant 0 : i32
    %c0_i32_0 = arith.constant 0 : i32
    %c0_i32_1 = arith.constant 0 : i32
    return %c0_i32, %c0_i32_0 : i32, i32
  }
  func.func @transform_3(%arg0: i32, %arg1: i32) -> (i32, i32) {
    %c0_i32 = arith.constant 0 : i32
    %c0_i32_0 = arith.constant 0 : i32
    %c0_i32_1 = arith.constant 0 : i32
    return %c0_i32, %c0_i32_0 : i32, i32
  }
  func.func @transform_4(%arg0: i32, %arg1: i32) -> (i32, i32) {
    %c0_i32 = arith.constant 0 : i32
    %c0_i32_0 = arith.constant 0 : i32
    %c0_i32_1 = arith.constant 0 : i32
    return %c0_i32, %c0_i32_0 : i32, i32
  }
  func.func @transform_5(%arg0: i32, %arg1: i32) -> (i32, i32) {
    %c0_i32 = arith.constant 0 : i32
    %c0_i32_0 = arith.constant 0 : i32
    %c0_i32_1 = arith.constant 0 : i32
    return %c0_i32, %c0_i32_0 : i32, i32
  }
  func.func @transform_6(%arg0: i32, %arg1: i32) -> (i32, i32) {
    %c0_i32 = arith.constant 0 : i32
    %c0_i32_0 = arith.constant 0 : i32
    %c0_i32_1 = arith.constant 0 : i32
    return %c0_i32, %c0_i32_0 : i32, i32
  }
  func.func @transform_7(%arg0: i32, %arg1: i32) -> (i32, i32) {
    %c0_i32 = arith.constant 0 : i32
    %c0_i32_0 = arith.constant 0 : i32
    %c0_i32_1 = arith.constant 0 : i32
    return %c0_i32, %c0_i32_0 : i32, i32
  }
  func.func @transform_8(%arg0: i32, %arg1: i32) -> (i32, i32) {
    %c0_i32 = arith.constant 0 : i32
    %c0_i32_0 = arith.constant 0 : i32
    %c0_i32_1 = arith.constant 0 : i32
    return %c0_i32, %c0_i32_0 : i32, i32
  }
  func.func @transform_9(%arg0: i32, %arg1: i32) -> (i32, i32) {
    %c0_i32 = arith.constant 0 : i32
    %c0_i32_0 = arith.constant 0 : i32
    %c0_i32_1 = arith.constant 0 : i32
    return %c0_i32, %c0_i32_0 : i32, i32
  }
  func.func @transform_10(%arg0: i32, %arg1: i32) -> (i32, i32, i32) {
    %c0_i32 = arith.constant 0 : i32
    %c0_i32_0 = arith.constant 0 : i32
    return %arg0, %arg1, %c0_i32 : i32, i32, i32
  }
}

</mosaic_0001>

<llo_original>
// kernel: tpu_custom_call.1
$region0: #{tpu_custom_call.1}
  #allocation0 [shape = 'u32[]', space=smem, size = 0x4, offset = 0x4, fixed_abs, tag = 'smem constant byte address 0x4 - core index']
  #allocation1 [shape = 'u32[144,128]{1,0:T(1,128)}', space=vmem, size = 0x12000, scoped, tag = 'internal scratch']
  #allocation2 [shape = 'bf16[8,64]{1,0:T(8,128)(2,1)}', space=vmem, size = 0x800, scoped, tag = 'scratch operand']
  %s0 = inlined_call_operand.vmem [shape: f32[2,8,32], index: 0, kind: input, shape index: {}]
  %s1 = inlined_call_operand.hbm [shape: bf16[2,8,32], index: 1, kind: input, shape index: {}]
  %s2 = inlined_call_operand.vmem [shape: bf16[32,32], index: 2, kind: input, shape index: {}]
  %s3 = inlined_call_operand.vmem [shape: bf16[32,64], index: 3, kind: input, shape index: {}]
  %s4 = inlined_call_operand.hbm [shape: bf16[32,32], index: 4, kind: input, shape index: {}]
  %s5 = inlined_call_operand.hbm [shape: bf16[32,64], index: 5, kind: input, shape index: {}]
  %s6 = inlined_call_operand.vmem [shape: bf16[64,32], index: 6, kind: input, shape index: {}]
  %s7 = inlined_call_operand.vmem [shape: f32[1,64], index: 7, kind: input, shape index: {}]
  %s8 = inlined_call_operand.vmem [shape: f32[1,64], index: 8, kind: input, shape index: {}]
  %s9 = inlined_call_operand.vmem [shape: f32[7,32], index: 9, kind: input, shape index: {}]
  %s10 = inlined_call_operand.hbm [shape: f32[2,8,32], index: 10, kind: output, shape index: {}]
  %s11 = sld [smem:[#allocation0]]
  $region89: #{tpu_custom_call.1} parent=0
    _
  %s13 = ssub.s32 1, %s11
  %s14 = scalar_select 0, %s13, %s11
  $region1: #{tpu_custom_call.1} parent=0
    #allocation3 [shape = 'u8[4096]{0}', space=vmem, size = 0x1000, scoped, tag = 'input window, operand 1']
    #allocation4 [shape = 's32[2]{0}', space=sflag, size = 0x8, scoped, tag = 'scoped memory for tpu_custom_call.1']
    #allocation5 [shape = 's32[2]{0}', space=sflag, size = 0x8, scoped, tag = 'scoped memory for tpu_custom_call.1']
    #allocation6 [shape = 'u8[8192]{0}', space=vmem, size = 0x2000, scoped, tag = 'input window, operand 4, single buffered']
    #allocation7 [shape = 's32[1]{0}', space=sflag, size = 0x4, scoped, tag = 'scoped memory for tpu_custom_call.1']
    #allocation8 [shape = 'u8[8192]{0}', space=vmem, size = 0x2000, scoped, tag = 'input window, operand 5, single buffered']
    #allocation9 [shape = 'u8[8192]{0}', space=vmem, size = 0x2000, scoped, tag = 'output window, operand 0']
    %15 = vsyncpa [#allocation4], 0
    %s16 = scalar_lea.sflag [#allocation4], 1
    %17 = vsyncpa %s16, 0
    %18 = vsyncpa [#allocation7], 0
    %19 = vsyncpa [#allocation5], 0
    %s20 = scalar_lea.sflag [#allocation5], 1
    %21 = vsyncpa %s20, 0
    loop: start=0, step=1, limit=4
    $region2: #{tpu_custom_call.1} parent=1 // loop_pre_header
      _
    $region3: #{tpu_custom_call.1} parent=1 // loop_header
      %s23 = sphi 0, %s27
      %p24 = scmp.ge.s32.totalorder %s23, 4
      %s30 = sphi 0, %s42
      %s31 = sphi 0, %s38
      %s32 = sphi 0, %s30
      %s33 = sphi 0, %s31
      %s34 = sphi 0, %s32
      %s35 = sphi 0, %s33
      %s47 = sphi 0, %s49
      %s50 = sphi 0, %s47
      %s51 = sphi 0, %s50
      %s67 = sphi 0, %s51
      %s73 = sphi 0, %s75
      %s76 = sphi 0, %s73
      %s77 = sphi 0, %s76
      %s93 = sphi 0, %s77
      %s97 = sphi 0, %s97
      %s99 = sphi 0, %s97
      %s100 = sphi 0, %s99
      %s114 = sphi 0, %s100
      %s118 = sphi 0, %s118
      %s120 = sphi 0, %s118
      %s121 = sphi 0, %s120
      %s135 = sphi 0, %s121
      %s139 = sphi 0, %s139
      %s141 = sphi 0, %s139
      %s142 = sphi 0, %s141
      %s156 = sphi 0, %s142
      %s160 = sphi 0, %s160
      %s162 = sphi 0, %s160
      %s163 = sphi 0, %s162
      %s177 = sphi 0, %s163
      %s181 = sphi 0, %s181
      %s183 = sphi 0, %s181
      %s184 = sphi 0, %s183
      %s198 = sphi 0, %s184
      %s202 = sphi 0, %s202
      %s204 = sphi 0, %s202
      %s205 = sphi 0, %s204
      %s219 = sphi 0, %s205
      %s223 = sphi 0, %s223
      %s225 = sphi 0, %s223
      %s226 = sphi 0, %s225
      %s240 = sphi 0, %s226
      %s244 = sphi 0, %s244
      %s246 = sphi 0, %s244
      %s247 = sphi 0, %s246
      %s261 = sphi 0, %s247
      %s269 = sphi 0, %s271
      %s272 = sphi 0, %s269
      %s273 = sphi 0, %s272
      %s289 = sphi 0, %s273
    $region4: #{tpu_custom_call.1} parent=1 // loop_header_branch
      %26 = sbr.rel (%p24) target = $region8
    $region5: #{tpu_custom_call.1} parent=1 // loop_body
      %s28 = ssub.s32 %s23, 1
      %s29 = ssub.s32 %s23, 2
      %s36 = sadd.s32 1, %s31
      %p37 = scmp.ge.s32.totalorder %s36, 1
      %s38 = scalar_select %p37, 0, %s36
      %s39 = sadd.s32 1, %s30
      %s40 = scalar_select %p37, %s39, %s30
      %p41 = scmp.ge.s32.totalorder %s40, 2
      %s42 = scalar_select %p41, 0, %s40
      %s43 = ssub.s32 %s30, %s42
      %s44 = ssub.s32 %s31, %s38
      %s45 = sor.u32 %s43, %s44
      %p46 = scmp.eq.s32.totalorder %s45, 0
      %s48 = sadd.s32 %s47, 1
      %s49 = scalar_select %p46, %s47, %s48
      %p52 = pneg %p46
      %p53 = scmp.eq.s32.totalorder %s23, 1
      %p54 = por %p52, %p53
      %p55 = scmp.ne.s32.totalorder %s47, %s50
      %p56 = scmp.eq.s32.totalorder %s23, 0
      %p57 = por %p55, %p56
      %p58 = scmp.ne.s32.totalorder %s47, %s50
      %p59 = scmp.eq.s32.totalorder %s28, 1
      %p60 = por %p58, %p59
      %p61 = scmp.ne.s32.totalorder %s50, %s51
      %p62 = scmp.eq.s32.totalorder %s28, 0
      %p63 = por %p61, %p62
      %p64 = scmp.ne.s32.totalorder %s50, %s51
      %p65 = scmp.eq.s32.totalorder %s29, 1
      %p66 = por %p64, %p65
      %p68 = scmp.ne.s32.totalorder %s51, %s67
      %p69 = scmp.eq.s32.totalorder %s29, 0
      %p70 = por %p68, %p69
      %s71 = ssub.s32 %s30, %s42
      %p72 = scmp.eq.s32.totalorder %s71, 0
      %s74 = sadd.s32 %s73, 1
      %s75 = scalar_select %p72, %s73, %s74
      %p78 = pneg %p72
      %p79 = scmp.eq.s32.totalorder %s23, 1
      %p80 = por %p78, %p79
      %p81 = scmp.ne.s32.totalorder %s73, %s76
      %p82 = scmp.eq.s32.totalorder %s23, 0
      %p83 = por %p81, %p82
      %p84 = scmp.ne.s32.totalorder %s73, %s76
      %p85 = scmp.eq.s32.totalorder %s28, 1
      %p86 = por %p84, %p85
      %p87 = scmp.ne.s32.totalorder %s76, %s77
      %p88 = scmp.eq.s32.totalorder %s28, 0
      %p89 = por %p87, %p88
      %p90 = scmp.ne.s32.totalorder %s76, %s77
      %p91 = scmp.eq.s32.totalorder %s29, 1
      %p92 = por %p90, %p91
      %p94 = scmp.ne.s32.totalorder %s77, %s93
      %p95 = scmp.eq.s32.totalorder %s29, 0
      %p96 = por %p94, %p95
      %s98 = sadd.s32 %s97, 1
      %p101 = scmp.eq.s32.totalorder %s23, 1
      %p102 = scmp.ne.s32.totalorder %s97, %s99
      %p103 = scmp.eq.s32.totalorder %s23, 0
      %p104 = por %p102, %p103
      %p105 = scmp.ne.s32.totalorder %s97, %s99
      %p106 = scmp.eq.s32.totalorder %s28, 1
      %p107 = por %p105, %p106
      %p108 = scmp.ne.s32.totalorder %s99, %s100
      %p109 = scmp.eq.s32.totalorder %s28, 0
      %p110 = por %p108, %p109
      %p111 = scmp.ne.s32.totalorder %s99, %s100
      %p112 = scmp.eq.s32.totalorder %s29, 1
      %p113 = por %p111, %p112
      %p115 = scmp.ne.s32.totalorder %s100, %s114
      %p116 = scmp.eq.s32.totalorder %s29, 0
      %p117 = por %p115, %p116
      %s119 = sadd.s32 %s118, 1
      %p122 = scmp.eq.s32.totalorder %s23, 1
      %p123 = scmp.ne.s32.totalorder %s118, %s120
      %p124 = scmp.eq.s32.totalorder %s23, 0
      %p125 = por %p123, %p124
      %p126 = scmp.ne.s32.totalorder %s118, %s120
      %p127 = scmp.eq.s32.totalorder %s28, 1
      %p128 = por %p126, %p127
      %p129 = scmp.ne.s32.totalorder %s120, %s121
      %p130 = scmp.eq.s32.totalorder %s28, 0
      %p131 = por %p129, %p130
      %p132 = scmp.ne.s32.totalorder %s120, %s121
      %p133 = scmp.eq.s32.totalorder %s29, 1
      %p134 = por %p132, %p133
      %p136 = scmp.ne.s32.totalorder %s121, %s135
      %p137 = scmp.eq.s32.totalorder %s29, 0
      %p138 = por %p136, %p137
      %s140 = sadd.s32 %s139, 1
      %p143 = scmp.eq.s32.totalorder %s23, 1
      %p144 = scmp.ne.s32.totalorder %s139, %s141
      %p145 = scmp.eq.s32.totalorder %s23, 0
      %p146 = por %p144, %p145
      %p147 = scmp.ne.s32.totalorder %s139, %s141
      %p148 = scmp.eq.s32.totalorder %s28, 1
      %p149 = por %p147, %p148
      %p150 = scmp.ne.s32.totalorder %s141, %s142
      %p151 = scmp.eq.s32.totalorder %s28, 0
      %p152 = por %p150, %p151
      %p153 = scmp.ne.s32.totalorder %s141, %s142
      %p154 = scmp.eq.s32.totalorder %s29, 1
      %p155 = por %p153, %p154
      %p157 = scmp.ne.s32.totalorder %s142, %s156
      %p158 = scmp.eq.s32.totalorder %s29, 0
      %p159 = por %p157, %p158
      %s161 = sadd.s32 %s160, 1
      %p164 = scmp.eq.s32.totalorder %s23, 1
      %p165 = scmp.ne.s32.totalorder %s160, %s162
      %p166 = scmp.eq.s32.totalorder %s23, 0
      %p167 = por %p165, %p166
      %p168 = scmp.ne.s32.totalorder %s160, %s162
      %p169 = scmp.eq.s32.totalorder %s28, 1
      %p170 = por %p168, %p169
      %p171 = scmp.ne.s32.totalorder %s162, %s163
      %p172 = scmp.eq.s32.totalorder %s28, 0
      %p173 = por %p171, %p172
      %p174 = scmp.ne.s32.totalorder %s162, %s163
      %p175 = scmp.eq.s32.totalorder %s29, 1
      %p176 = por %p174, %p175
      %p178 = scmp.ne.s32.totalorder %s163, %s177
      %p179 = scmp.eq.s32.totalorder %s29, 0
      %p180 = por %p178, %p179
      %s182 = sadd.s32 %s181, 1
      %p185 = scmp.eq.s32.totalorder %s23, 1
      %p186 = scmp.ne.s32.totalorder %s181, %s183
      %p187 = scmp.eq.s32.totalorder %s23, 0
      %p188 = por %p186, %p187
      %p189 = scmp.ne.s32.totalorder %s181, %s183
      %p190 = scmp.eq.s32.totalorder %s28, 1
      %p191 = por %p189, %p190
      %p192 = scmp.ne.s32.totalorder %s183, %s184
      %p193 = scmp.eq.s32.totalorder %s28, 0
      %p194 = por %p192, %p193
      %p195 = scmp.ne.s32.totalorder %s183, %s184
      %p196 = scmp.eq.s32.totalorder %s29, 1
      %p197 = por %p195, %p196
      %p199 = scmp.ne.s32.totalorder %s184, %s198
      %p200 = scmp.eq.s32.totalorder %s29, 0
      %p201 = por %p199, %p200
      %s203 = sadd.s32 %s202, 1
      %p206 = scmp.eq.s32.totalorder %s23, 1
      %p207 = scmp.ne.s32.totalorder %s202, %s204
      %p208 = scmp.eq.s32.totalorder %s23, 0
      %p209 = por %p207, %p208
      %p210 = scmp.ne.s32.totalorder %s202, %s204
      %p211 = scmp.eq.s32.totalorder %s28, 1
      %p212 = por %p210, %p211
      %p213 = scmp.ne.s32.totalorder %s204, %s205
      %p214 = scmp.eq.s32.totalorder %s28, 0
      %p215 = por %p213, %p214
      %p216 = scmp.ne.s32.totalorder %s204, %s205
      %p217 = scmp.eq.s32.totalorder %s29, 1
      %p218 = por %p216, %p217
      %p220 = scmp.ne.s32.totalorder %s205, %s219
      %p221 = scmp.eq.s32.totalorder %s29, 0
      %p222 = por %p220, %p221
      %s224 = sadd.s32 %s223, 1
      %p227 = scmp.eq.s32.totalorder %s23, 1
      %p228 = scmp.ne.s32.totalorder %s223, %s225
      %p229 = scmp.eq.s32.totalorder %s23, 0
      %p230 = por %p228, %p229
      %p231 = scmp.ne.s32.totalorder %s223, %s225
      %p232 = scmp.eq.s32.totalorder %s28, 1
      %p233 = por %p231, %p232
      %p234 = scmp.ne.s32.totalorder %s225, %s226
      %p235 = scmp.eq.s32.totalorder %s28, 0
      %p236 = por %p234, %p235
      %p237 = scmp.ne.s32.totalorder %s225, %s226
      %p238 = scmp.eq.s32.totalorder %s29, 1
      %p239 = por %p237, %p238
      %p241 = scmp.ne.s32.totalorder %s226, %s240
      %p242 = scmp.eq.s32.totalorder %s29, 0
      %p243 = por %p241, %p242
      %s245 = sadd.s32 %s244, 1
      %p248 = scmp.eq.s32.totalorder %s23, 1
      %p249 = scmp.ne.s32.totalorder %s244, %s246
      %p250 = scmp.eq.s32.totalorder %s23, 0
      %p251 = por %p249, %p250
      %p252 = scmp.ne.s32.totalorder %s244, %s246
      %p253 = scmp.eq.s32.totalorder %s28, 1
      %p254 = por %p252, %p253
      %p255 = scmp.ne.s32.totalorder %s246, %s247
      %p256 = scmp.eq.s32.totalorder %s28, 0
      %p257 = por %p255, %p256
      %p258 = scmp.ne.s32.totalorder %s246, %s247
      %p259 = scmp.eq.s32.totalorder %s29, 1
      %p260 = por %p258, %p259
      %p262 = scmp.ne.s32.totalorder %s247, %s261
      %p263 = scmp.eq.s32.totalorder %s29, 0
      %p264 = por %p262, %p263
      %s265 = ssub.s32 %s30, %s42
      %s266 = ssub.s32 %s31, %s38
      %s267 = sor.u32 %s265, %s266
      %p268 = scmp.eq.s32.totalorder %s267, 0
      %s270 = sadd.s32 %s269, 1
      %s271 = scalar_select %p268, %s269, %s270
      %p274 = pneg %p268
      %p275 = scmp.eq.s32.totalorder %s23, 1
      %p276 = por %p274, %p275
      %p277 = scmp.ne.s32.totalorder %s269, %s272
      %p278 = scmp.eq.s32.totalorder %s23, 0
      %p279 = por %p277, %p278
      %p280 = scmp.ne.s32.totalorder %s269, %s272
      %p281 = scmp.eq.s32.totalorder %s28, 1
      %p282 = por %p280, %p281
      %p283 = scmp.ne.s32.totalorder %s272, %s273
      %p284 = scmp.eq.s32.totalorder %s28, 0
      %p285 = por %p283, %p284
      %p286 = scmp.ne.s32.totalorder %s272, %s273
      %p287 = scmp.eq.s32.totalorder %s29, 1
      %p288 = por %p286, %p287
      %p290 = scmp.ne.s32.totalorder %s273, %s289
      %p291 = scmp.eq.s32.totalorder %s29, 0
      %p292 = por %p290, %p291
      %p293 = scmp.le.s32.totalorder 1, %s23
      %p294 = scmp.lt.s32.totalorder %s23, 3
      %p295 = pnand %p293, %p294
      %p296 = pneg %p295
      // Predicated region
      $region9: #{tpu_custom_call.1} parent=5 // pred_check
        _
      $region10: #{tpu_custom_call.1} parent=5 // pred_check_branch
        %298 = sbr.rel (%p295) target = $region12
      $region11: #{tpu_custom_call.1} parent=5 // pred_region
        %s299 = ssub.s32 %s23, 1
        // Predicated region
        $region13: #{tpu_custom_call.1} parent=11 // pred_check
          %p300 = pneg %p110
        $region14: #{tpu_custom_call.1} parent=11 // pred_check_branch
          %302 = sbr.rel (%p300) target = $region16
        $region15: #{tpu_custom_call.1} parent=11 // pred_region
          _
        $region16: #{tpu_custom_call.1} parent=11 // pred_fallthru
          _
        // Predicated region
        $region17: #{tpu_custom_call.1} parent=11 // pred_check
          %p303 = pneg %p131
        $region18: #{tpu_custom_call.1} parent=11 // pred_check_branch
          %305 = sbr.rel (%p303) target = $region20
        $region19: #{tpu_custom_call.1} parent=11 // pred_region
          _
        $region20: #{tpu_custom_call.1} parent=11 // pred_fallthru
          _
        // Predicated region
        $region21: #{tpu_custom_call.1} parent=11 // pred_check
          %p306 = pneg %p152
        $region22: #{tpu_custom_call.1} parent=11 // pred_check_branch
          %308 = sbr.rel (%p306) target = $region24
        $region23: #{tpu_custom_call.1} parent=11 // pred_region
          %s310 = ssub.s32 256, 256
          %311 = vsyncadd [#allocation7], %s310
          %s312 = sshll.u32 [#allocation6], 4
          %s313 = int_to_ptr.vmem [resolvable:$true] %s312
          %318 = dma.hbm_to_vmem [thread:$0]  %s4, 256, %s313, [#allocation7], 64, 64, 4
        $region24: #{tpu_custom_call.1} parent=11 // pred_fallthru
          _
        // Predicated region
        $region25: #{tpu_custom_call.1} parent=11 // pred_check
          %p319 = pneg %p173
        $region26: #{tpu_custom_call.1} parent=11 // pred_check_branch
          %321 = sbr.rel (%p319) target = $region28
        $region27: #{tpu_custom_call.1} parent=11 // pred_region
          %s323 = ssub.s32 256, 256
          %324 = vsyncadd [#allocation7], %s323
          %s325 = sshll.u32 [#allocation8], 4
          %s326 = int_to_ptr.vmem [resolvable:$true] %s325
          %331 = dma.hbm_to_vmem [thread:$0]  %s5, 256, %s326, [#allocation7], 64, 64, 4
        $region28: #{tpu_custom_call.1} parent=11 // pred_fallthru
          _
        // Predicated region
        $region29: #{tpu_custom_call.1} parent=11 // pred_check
          %p332 = pneg %p194
        $region30: #{tpu_custom_call.1} parent=11 // pred_check_branch
          %334 = sbr.rel (%p332) target = $region32
        $region31: #{tpu_custom_call.1} parent=11 // pred_region
          _
        $region32: #{tpu_custom_call.1} parent=11 // pred_fallthru
          _
        // Predicated region
        $region33: #{tpu_custom_call.1} parent=11 // pred_check
          %p335 = pneg %p215
        $region34: #{tpu_custom_call.1} parent=11 // pred_check_branch
          %337 = sbr.rel (%p335) target = $region36
        $region35: #{tpu_custom_call.1} parent=11 // pred_region
          _
        $region36: #{tpu_custom_call.1} parent=11 // pred_fallthru
          _
        // Predicated region
        $region37: #{tpu_custom_call.1} parent=11 // pred_check
          %p338 = pneg %p236
        $region38: #{tpu_custom_call.1} parent=11 // pred_check_branch
          %340 = sbr.rel (%p338) target = $region40
        $region39: #{tpu_custom_call.1} parent=11 // pred_region
          _
        $region40: #{tpu_custom_call.1} parent=11 // pred_fallthru
          _
        // Predicated region
        $region41: #{tpu_custom_call.1} parent=11 // pred_check
          %p341 = pneg %p257
        $region42: #{tpu_custom_call.1} parent=11 // pred_check_branch
          %343 = sbr.rel (%p341) target = $region44
        $region43: #{tpu_custom_call.1} parent=11 // pred_region
          _
        $region44: #{tpu_custom_call.1} parent=11 // pred_fallthru
          _
      $region12: #{tpu_custom_call.1} parent=5 // pred_fallthru
        _
      %p344 = scmp.lt.s32.totalorder %s23, 2
      // Predicated region
      $region45: #{tpu_custom_call.1} parent=5 // pred_check
        %p345 = pneg %p344
      $region46: #{tpu_custom_call.1} parent=5 // pred_check_branch
        %347 = sbr.rel (%p345) target = $region48
      $region47: #{tpu_custom_call.1} parent=5 // pred_region
        // Predicated region
        $region49: #{tpu_custom_call.1} parent=47 // pred_check
          %p348 = pneg %p57
        $region50: #{tpu_custom_call.1} parent=47 // pred_check_branch
          %350 = sbr.rel (%p348) target = $region52
        $region51: #{tpu_custom_call.1} parent=47 // pred_region
          %p351 = scmp.lt.s32.totalorder %s30, 1
          %s352 = scalar_select %p351, %s30, 1
          %p353 = scmp.lt.s32.totalorder %s31, 0
          %s354 = scalar_select %p353, %s31, 0
          %s355 = sadd.s32 %s354, %s352
          %s356 = smul.addr %s355, 8
          %s357 = scalar_lea.vmem %s0, %s356
        $region52: #{tpu_custom_call.1} parent=47 // pred_fallthru
          _
        // Predicated region
        $region53: #{tpu_custom_call.1} parent=47 // pred_check
          %p358 = pneg %p83
        $region54: #{tpu_custom_call.1} parent=47 // pred_check_branch
          %360 = sbr.rel (%p358) target = $region56
        $region55: #{tpu_custom_call.1} parent=47 // pred_region
          %s361 = sand.u32 %s73, 1
          %s362 = scalar_lea.sflag [#allocation4], %s361
          %s363 = sand.u32 %s73, 1
          %s364 = smul.addr %s363, 4
          %s365 = scalar_lea.vmem [#allocation3], %s364
          %s367 = ssub.s32 64, 64
          %368 = vsyncadd %s362, %s367
          %s369 = smul.addr %s30, 64
          %s370 = scalar_lea.hbm %s1, %s369
          %s372 = sshll.u32 %s365, 4
          %s373 = int_to_ptr.vmem [resolvable:$true] %s372
          %375 = dma.hbm_to_vmem [thread:$0]  %s370, 64, %s373, %s362
        $region56: #{tpu_custom_call.1} parent=47 // pred_fallthru
          _
      $region48: #{tpu_custom_call.1} parent=5 // pred_fallthru
        _
      %p376 = scmp.le.s32.totalorder 1, %s23
      %p377 = scmp.lt.s32.totalorder %s23, 3
      %p378 = pnand %p376, %p377
      %p379 = pneg %p378
      // Predicated region
      $region57: #{tpu_custom_call.1} parent=5 // pred_check
        _
      $region58: #{tpu_custom_call.1} parent=5 // pred_check_branch
        %381 = sbr.rel (%p378) target = $region60
      $region59: #{tpu_custom_call.1} parent=5 // pred_region
        %s382 = ssub.s32 %s23, 1
        %s383 = sand.u32 %s76, 1
        %s384 = scalar_lea.sflag [#allocation4], %s383
        %s385 = sand.u32 %s76, 1
        %s386 = smul.addr %s385, 4
        %s387 = scalar_lea.vmem [#allocation3], %s386
        // Predicated region
        $region61: #{tpu_custom_call.1} parent=59 // pred_check
          %p388 = pneg %p89
        $region62: #{tpu_custom_call.1} parent=59 // pred_check_branch
          %390 = sbr.rel (%p388) target = $region64
        $region63: #{tpu_custom_call.1} parent=59 // pred_region
          %391 = dma.done %s384, 64
        $region64: #{tpu_custom_call.1} parent=59 // pred_fallthru
          _
        // Predicated region
        $region65: #{tpu_custom_call.1} parent=59 // pred_check
          %p392 = pneg %p152
        $region66: #{tpu_custom_call.1} parent=59 // pred_check_branch
          %394 = sbr.rel (%p392) target = $region68
        $region67: #{tpu_custom_call.1} parent=59 // pred_region
          %395 = dma.done [#allocation7], 256
        $region68: #{tpu_custom_call.1} parent=59 // pred_fallthru
          _
        // Predicated region
        $region69: #{tpu_custom_call.1} parent=59 // pred_check
          %p396 = pneg %p173
        $region70: #{tpu_custom_call.1} parent=59 // pred_check_branch
          %398 = sbr.rel (%p396) target = $region72
        $region71: #{tpu_custom_call.1} parent=59 // pred_region
          %399 = dma.done [#allocation7], 256
        $region72: #{tpu_custom_call.1} parent=59 // pred_fallthru
          _
        %p400 = scmp.lt.s32.totalorder %s32, 1
        %s401 = scalar_select %p400, %s32, 1
        %p402 = scmp.lt.s32.totalorder %s33, 0
        %s403 = scalar_select %p402, %s33, 0
        %s404 = sadd.s32 %s403, %s401
        %s405 = smul.addr %s404, 8
        %s406 = scalar_lea.vmem %s0, %s405
        %p407 = pneg %p63
        %p408 = pneg %p60
        %s409 = sand.u32 %s76, 1
        %s410 = scalar_lea.sflag [#allocation4], %s409
        %s411 = sand.u32 %s76, 1
        %s412 = smul.addr %s411, 4
        %s413 = scalar_lea.vmem [#allocation3], %s412
        %p414 = pneg %p89
        %p415 = pneg %p86
        %p416 = pneg %p110
        %p417 = pneg %p107
        %p418 = pneg %p131
        %p419 = pneg %p128
        %p420 = pneg %p152
        %p421 = pneg %p149
        %p422 = pneg %p173
        %p423 = pneg %p170
        %p424 = pneg %p194
        %p425 = pneg %p191
        %p426 = pneg %p215
        %p427 = pneg %p212
        %p428 = pneg %p236
        %p429 = pneg %p233
        %p430 = pneg %p257
        %p431 = pneg %p254
        %p432 = pneg %p285
        %p433 = pneg %p282
        %s434 = sand.u32 %s272, 1
        %s435 = scalar_lea.sflag [#allocation5], %s434
        %s436 = sand.u32 %s272, 1
        %s437 = smul.addr %s436, 8
        %s438 = scalar_lea.vmem [#allocation9], %s437
        %p439 = scmp.lt.s32.totalorder %s32, 1
        %s440 = scalar_select %p439, %s32, 1
        %p441 = scmp.lt.s32.totalorder %s33, 0
        %s442 = scalar_select %p441, %s33, 0
        %s443 = sadd.s32 %s442, %s440
        %s444 = smul.addr %s443, 8
        %s445 = scalar_lea.vmem %s0, %s444
        %p447 = scmp.eq.s32.totalorder %s33, 0
        // Predicated region
        $region73: #{tpu_custom_call.1} parent=59 // pred_check
          %p448 = pneg %p447
        $region74: #{tpu_custom_call.1} parent=59 // pred_check_branch
          %450 = sbr.rel (%p448) target = $region76
        $region75: #{tpu_custom_call.1} parent=59 // pred_region
          %v451 = vld [vmem:[%s387] sm:$0xf]
          %v452 = vld [vmem:[%s3] sm:$0xf]
          %v453 = vld [vmem:[%s3 + $0x4] sm:$0xf]
          %v454 = vld [vmem:[%s3 + $0x8] sm:$0xf]
          %v455 = vld [vmem:[%s3 + $0xc] sm:$0xf]
          %v456 = vld [vmem:[%s7] sm:$0x1]
          %v458 = vlaneseq
          %v459 = vshrl.u32 %v458, 7
          %v460 = vsub.s32 0, %v459
          %v461 = vrot.slane %v456, %v460
          %v467 = vunpack.c.l.b16 %v452
          %v468 = vunpack.c.l.b16 %v453
          %v469 = vunpack.c.l.b16 %v454
          %v470 = vunpack.c.l.b16 %v455
          %v471 = vpack.c.b16 %v468, %v467
          %v472 = vpack.c.b16 %v470, %v469
          %vm475 = vcmask 261120
          %v477 = vsel %vm475, %v451, 0
          %479 = vmatprep.subr.bf16.mxu0 0
          %480 = vmatpush1.bf16.msra.mxu0 0
          %481 = vmatprep.subr.bf16.mxu0 0
          %482 = vmatpush1.bf16.msra.mxu0 0
          %483 = vmatprep.subr.bf16.mxu0 0
          %484 = vmatpush1.bf16.msra.mxu0 0
          %485 = vmatprep.subr.bf16.mxu0 0
          %486 = vmatpush1.bf16.msra.mxu0 0
          %487 = vmatprep.subr.bf16.mxu0 0
          %488 = vmatpush1.bf16.msra.mxu0 0
          %489 = vmatprep.subr.bf16.mxu0 0
          %490 = vmatpush1.bf16.msra.mxu0 0
          %491 = vmatprep.subr.bf16.mxu0 0
          %492 = vmatpush1.bf16.msra.mxu0 %v472
          %493 = vmatprep.subr.bf16.mxu0 0
          %494 = vmatpush1.bf16.msra.mxu0 %v471
          %495 = vmatprep.subr.bf16.mxu0 0
          %496 = vmatpush2.bf16.msra.mxu0 0
          %497 = vmatprep.subr.bf16.mxu0 0
          %498 = vmatpush2.bf16.msra.mxu0 0
          %499 = vmatprep.subr.bf16.mxu0 0
          %500 = vmatpush2.bf16.msra.mxu0 0
          %501 = vmatprep.subr.bf16.mxu0 0
          %502 = vmatpush2.bf16.msra.mxu0 0
          %503 = vmatprep.subr.bf16.mxu0 0
          %504 = vmatpush2.bf16.msra.mxu0 0
          %505 = vmatprep.subr.bf16.mxu0 0
          %506 = vmatpush2.bf16.msra.mxu0 0
          %507 = vmatprep.subr.bf16.mxu0 0
          %508 = vmatpush2.bf16.msra.mxu0 0
          %509 = vmatprep.subr.bf16.mxu0 0
          %510 = vmatpush2.bf16.msra.mxu0 0
          %511 = vmatprep.mubr.bf16.mxu0 0
          %512 = vmatmul.mubr.bf16.gmra.mxu0 %v477
          %v513 = vpop.f32.mrf.mxu0
          %v514 = vadd.f32 %v461, %v513
          %v515 = vpop.f32.mrf.mxu0
          %v516 = vpop.f32.mrf.mxu0
          %v517 = vpop.f32.mrf.mxu0
          %518 = vdwg.mxu0
          %v519 = vpack.c.bf16 %v514, %v514
          %vm520 = vcmask 519168
          %521 = vst.msk [vmem:[#allocation2] sm:$0xf] %vm520, %v519
        $region76: #{tpu_custom_call.1} parent=59 // pred_fallthru
          _
        %v522 = vld [vmem:[%s9] sm:$0x7f]
        %s523 = smul.u32 %s33, 8
        %s524 = sshra.s32 %s523, 3
        %s525 = sand.u32 %s523, 7
        %s526 = smul.addr %s524, 4
        %s527 = scalar_lea.vmem %s387, %s526 [#allocation3]
        %v528 = vld [vmem:[%s527] sm:$0xf]
        %v529 = vld [vmem:[%s2] sm:$0xf]
        %v530 = vld [vmem:[%s2 + $0x4] sm:$0xf]
        %v531 = vld [vmem:[%s2 + $0x8] sm:$0xf]
        %v532 = vld [vmem:[%s2 + $0xc] sm:$0xf]
        %v533 = vlaneseq
        %v534 = vshrl.u32 %v533, 7
        %v535 = vsub.s32 0, %v534
        %v536 = vrot.slane %v522, %v535
        %v541 = vunpack.c.l.b16 %v529
        %v542 = vunpack.c.l.b16 %v530
        %v543 = vunpack.c.l.b16 %v531
        %v544 = vunpack.c.l.b16 %v532
        %v545 = vpack.c.b16 %v542, %v541
        %v546 = vpack.c.b16 %v544, %v543
        %vm549 = vcmask 261120
        %v551 = vsel %vm549, %v528, 0
        %553 = vmatprep.subr.bf16.mxu0 0
        %554 = vmatpush1.bf16.msra.mxu0 0
        %555 = vmatprep.subr.bf16.mxu0 0
        %556 = vmatpush1.bf16.msra.mxu0 0
        %557 = vmatprep.subr.bf16.mxu0 0
        %558 = vmatpush1.bf16.msra.mxu0 0
        %559 = vmatprep.subr.bf16.mxu0 0
        %560 = vmatpush1.bf16.msra.mxu0 0
        %561 = vmatprep.subr.bf16.mxu0 0
        %562 = vmatpush1.bf16.msra.mxu0 0
        %563 = vmatprep.subr.bf16.mxu0 0
        %564 = vmatpush1.bf16.msra.mxu0 0
        %565 = vmatprep.subr.bf16.mxu0 0
        %566 = vmatpush1.bf16.msra.mxu0 %v546
        %567 = vmatprep.subr.bf16.mxu0 0
        %568 = vmatpush1.bf16.msra.mxu0 %v545
        %569 = vmatprep.subr.bf16.mxu0 0
        %570 = vmatpush2.bf16.msra.mxu0 0
        %571 = vmatprep.subr.bf16.mxu0 0
        %572 = vmatpush2.bf16.msra.mxu0 0
        %573 = vmatprep.subr.bf16.mxu0 0
        %574 = vmatpush2.bf16.msra.mxu0 0
        %575 = vmatprep.subr.bf16.mxu0 0
        %576 = vmatpush2.bf16.msra.mxu0 0
        %577 = vmatprep.subr.bf16.mxu0 0
        %578 = vmatpush2.bf16.msra.mxu0 0
        %579 = vmatprep.subr.bf16.mxu0 0
        %580 = vmatpush2.bf16.msra.mxu0 0
        %581 = vmatprep.subr.bf16.mxu0 0
        %582 = vmatpush2.bf16.msra.mxu0 0
        %583 = vmatprep.subr.bf16.mxu0 0
        %584 = vmatpush2.bf16.msra.mxu0 0
        %585 = vmatprep.mubr.bf16.mxu0 0
        %586 = vmatmul.mubr.bf16.gmra.mxu0 %v551
        %v587 = vpop.f32.mrf.mxu0
        %v588 = vadd.f32 %v536, %v587
        %v589 = vpop.f32.mrf.mxu0
        %v590 = vpop.f32.mrf.mxu0
        %v591 = vpop.f32.mrf.mxu0
        %592 = vdwg.mxu0
        %v593 = vpack.c.bf16 %v588, %v588
        %v594 = vld [vmem:[#allocation2] sm:$0xf]
        %vm595 = vcmask 64512
        %v597 = vsel %vm595, %v593, 0
        %v600 = vsel %vm595, %v594, 0
        %602 = vmatprep.subr.bf16.mxu0 0
        %603 = vmatpush1.bf16.xpose.msra.mxu0 0
        %604 = vmatprep.subr.bf16.mxu0 0
        %605 = vmatpush1.bf16.xpose.msra.mxu0 0
        %606 = vmatprep.subr.bf16.mxu0 0
        %607 = vmatpush1.bf16.xpose.msra.mxu0 0
        %608 = vmatprep.subr.bf16.mxu0 0
        %609 = vmatpush1.bf16.xpose.msra.mxu0 0
        %610 = vmatprep.subr.bf16.mxu0 0
        %611 = vmatpush1.bf16.xpose.msra.mxu0 0
        %612 = vmatprep.subr.bf16.mxu0 0
        %613 = vmatpush1.bf16.xpose.msra.mxu0 0
        %614 = vmatprep.subr.bf16.mxu0 0
        %615 = vmatpush1.bf16.xpose.msra.mxu0 0
        %616 = vmatprep.subr.bf16.mxu0 0
        %617 = vmatpush1.bf16.xpose.msra.mxu0 %v600
        %618 = vmatprep.subr.bf16.mxu0 0
        %619 = vmatpush2.bf16.xpose.msra.mxu0 0
        %620 = vmatprep.subr.bf16.mxu0 0
        %621 = vmatpush2.bf16.xpose.msra.mxu0 0
        %622 = vmatprep.subr.bf16.mxu0 0
        %623 = vmatpush2.bf16.xpose.msra.mxu0 0
        %624 = vmatprep.subr.bf16.mxu0 0
        %625 = vmatpush2.bf16.xpose.msra.mxu0 0
        %626 = vmatprep.subr.bf16.mxu0 0
        %627 = vmatpush2.bf16.xpose.msra.mxu0 0
        %628 = vmatprep.subr.bf16.mxu0 0
        %629 = vmatpush2.bf16.xpose.msra.mxu0 0
        %630 = vmatprep.subr.bf16.mxu0 0
        %631 = vmatpush2.bf16.xpose.msra.mxu0 0
        %632 = vmatprep.subr.bf16.mxu0 0
        %633 = vmatpush2.bf16.xpose.msra.mxu0 0
        %634 = vmatprep.mubr.bf16.mxu0 0
        %635 = vmatmul.mubr.bf16.gmra.mxu0 %v597
        %v636 = vpop.f32.mrf.mxu0
        %v637 = vadd.f32 0.0, %v636
        %v638 = vpop.f32.mrf.mxu0
        %v639 = vpop.f32.mrf.mxu0
        %v640 = vpop.f32.mrf.mxu0
        %641 = vdwg.mxu0
        %v642 = vsel %vm595, %v637, -inf
        %643 = vmax.xlane.f32.xlu0 %v642
        %v644 = vpop.xlane.xlu0 %643
        %v645 = vsub.f32 %v637, %v644
        %v646 = vmul.f32 %v645, 1.442695
        %v647 = vpow.pop %v646
        %v648 = vsel %vm595, %v647, 0.0
        %649 = vadd.xlane.f32.xlu0 %v648
        %v650 = vpop.xlane.xlu0 %649
        %v651 = vrcp.pop %v650
        %v652 = vmul.f32 %v650, %v651
        %v653 = vsub.f32 2.0, %v652
        %v654 = vmul.f32 %v651, %v653
        %v655 = vmul.f32 %v647, %v654
        %v656 = vpack.c.bf16 %v655, %v655
        %v658 = vunpack.c.l.b16 %v594
        %v659 = vpack.c.b16 %v658, %v658
        %660 = vrot.lane.b32.xlu0 %v659, 96
        %v661 = vpop.permute.xlu0 %660
        %v663 = vsel %vm595, %v656, 0
        %vm665 = vcmask 1043456
        %v667 = vsel %vm665, %v661, 0
        %669 = vmatprep.subr.bf16.mxu0 0
        %670 = vmatpush1.bf16.msra.mxu0 0
        %671 = vmatprep.subr.bf16.mxu0 0
        %672 = vmatpush1.bf16.msra.mxu0 0
        %673 = vmatprep.subr.bf16.mxu0 0
        %674 = vmatpush1.bf16.msra.mxu0 0
        %675 = vmatprep.subr.bf16.mxu0 0
        %676 = vmatpush1.bf16.msra.mxu0 0
        %677 = vmatprep.subr.bf16.mxu0 0
        %678 = vmatpush1.bf16.msra.mxu0 0
        %679 = vmatprep.subr.bf16.mxu0 0
        %680 = vmatpush1.bf16.msra.mxu0 0
        %681 = vmatprep.subr.bf16.mxu0 0
        %682 = vmatpush1.bf16.msra.mxu0 0
        %683 = vmatprep.subr.bf16.mxu0 0
        %684 = vmatpush1.bf16.msra.mxu0 %v667
        %685 = vmatprep.subr.bf16.mxu0 0
        %686 = vmatpush2.bf16.msra.mxu0 0
        %687 = vmatprep.subr.bf16.mxu0 0
        %688 = vmatpush2.bf16.msra.mxu0 0
        %689 = vmatprep.subr.bf16.mxu0 0
        %690 = vmatpush2.bf16.msra.mxu0 0
        %691 = vmatprep.subr.bf16.mxu0 0
        %692 = vmatpush2.bf16.msra.mxu0 0
        %693 = vmatprep.subr.bf16.mxu0 0
        %694 = vmatpush2.bf16.msra.mxu0 0
        %695 = vmatprep.subr.bf16.mxu0 0
        %696 = vmatpush2.bf16.msra.mxu0 0
        %697 = vmatprep.subr.bf16.mxu0 0
        %698 = vmatpush2.bf16.msra.mxu0 0
        %699 = vmatprep.subr.bf16.mxu0 0
        %700 = vmatpush2.bf16.msra.mxu0 0
        %701 = vmatprep.mubr.bf16.mxu0 0
        %702 = vmatmul.mubr.bf16.gmra.mxu0 %v663
        %v703 = vpop.f32.mrf.mxu0
        %v704 = vadd.f32 0.0, %v703
        %v705 = vpop.f32.mrf.mxu0
        %v706 = vpop.f32.mrf.mxu0
        %v707 = vpop.f32.mrf.mxu0
        %708 = vdwg.mxu0
        %710 = vrot.lane.b32.xlu0 %v593, 120
        %v711 = vpop.permute.xlu0 %710
        %712 = vrot.lane.b32.xlu0 %v659, 120
        %v713 = vpop.permute.xlu0 %712
        %v715 = vsel %vm595, %v711, 0
        %v718 = vsel %vm595, %v713, 0
        %720 = vmatprep.subr.bf16.mxu0 0
        %721 = vmatpush1.bf16.xpose.msra.mxu0 0
        %722 = vmatprep.subr.bf16.mxu0 0
        %723 = vmatpush1.bf16.xpose.msra.mxu0 0
        %724 = vmatprep.subr.bf16.mxu0 0
        %725 = vmatpush1.bf16.xpose.msra.mxu0 0
        %726 = vmatprep.subr.bf16.mxu0 0
        %727 = vmatpush1.bf16.xpose.msra.mxu0 0
        %728 = vmatprep.subr.bf16.mxu0 0
        %729 = vmatpush1.bf16.xpose.msra.mxu0 0
        %730 = vmatprep.subr.bf16.mxu0 0
        %731 = vmatpush1.bf16.xpose.msra.mxu0 0
        %732 = vmatprep.subr.bf16.mxu0 0
        %733 = vmatpush1.bf16.xpose.msra.mxu0 0
        %734 = vmatprep.subr.bf16.mxu0 0
        %735 = vmatpush1.bf16.xpose.msra.mxu0 %v718
        %736 = vmatprep.subr.bf16.mxu0 0
        %737 = vmatpush2.bf16.xpose.msra.mxu0 0
        %738 = vmatprep.subr.bf16.mxu0 0
        %739 = vmatpush2.bf16.xpose.msra.mxu0 0
        %740 = vmatprep.subr.bf16.mxu0 0
        %741 = vmatpush2.bf16.xpose.msra.mxu0 0
        %742 = vmatprep.subr.bf16.mxu0 0
        %743 = vmatpush2.bf16.xpose.msra.mxu0 0
        %744 = vmatprep.subr.bf16.mxu0 0
        %745 = vmatpush2.bf16.xpose.msra.mxu0 0
        %746 = vmatprep.subr.bf16.mxu0 0
        %747 = vmatpush2.bf16.xpose.msra.mxu0 0
        %748 = vmatprep.subr.bf16.mxu0 0
        %749 = vmatpush2.bf16.xpose.msra.mxu0 0
        %750 = vmatprep.subr.bf16.mxu0 0
        %751 = vmatpush2.bf16.xpose.msra.mxu0 0
        %752 = vmatprep.mubr.bf16.mxu0 0
        %753 = vmatmul.mubr.bf16.gmra.mxu0 %v715
        %v754 = vpop.f32.mrf.mxu0
        %v755 = vadd.f32 0.0, %v754
        %v756 = vpop.f32.mrf.mxu0
        %v757 = vpop.f32.mrf.mxu0
        %v758 = vpop.f32.mrf.mxu0
        %759 = vdwg.mxu0
        %v760 = vsel %vm595, %v755, -inf
        %761 = vmax.xlane.f32.xlu0 %v760
        %v762 = vpop.xlane.xlu0 %761
        %v763 = vsub.f32 %v755, %v762
        %v764 = vmul.f32 %v763, 1.442695
        %v765 = vpow.pop %v764
        %v766 = vsel %vm595, %v765, 0.0
        %767 = vadd.xlane.f32.xlu0 %v766
        %v768 = vpop.xlane.xlu0 %767
        %v769 = vrcp.pop %v768
        %v770 = vmul.f32 %v768, %v769
        %v771 = vsub.f32 2.0, %v770
        %v772 = vmul.f32 %v769, %v771
        %v773 = vmul.f32 %v765, %v772
        %v774 = vpack.c.bf16 %v773, %v773
        %775 = vrot.lane.b32.xlu0 %v659, 88
        %v776 = vpop.permute.xlu0 %775
        %v778 = vsel %vm595, %v774, 0
        %v781 = vsel %vm665, %v776, 0
        %783 = vmatprep.subr.bf16.mxu0 0
        %784 = vmatpush1.bf16.msra.mxu0 0
        %785 = vmatprep.subr.bf16.mxu0 0
        %786 = vmatpush1.bf16.msra.mxu0 0
        %787 = vmatprep.subr.bf16.mxu0 0
        %788 = vmatpush1.bf16.msra.mxu0 0
        %789 = vmatprep.subr.bf16.mxu0 0
        %790 = vmatpush1.bf16.msra.mxu0 0
        %791 = vmatprep.subr.bf16.mxu0 0
        %792 = vmatpush1.bf16.msra.mxu0 0
        %793 = vmatprep.subr.bf16.mxu0 0
        %794 = vmatpush1.bf16.msra.mxu0 0
        %795 = vmatprep.subr.bf16.mxu0 0
        %796 = vmatpush1.bf16.msra.mxu0 0
        %797 = vmatprep.subr.bf16.mxu0 0
        %798 = vmatpush1.bf16.msra.mxu0 %v781
        %799 = vmatprep.subr.bf16.mxu0 0
        %800 = vmatpush2.bf16.msra.mxu0 0
        %801 = vmatprep.subr.bf16.mxu0 0
        %802 = vmatpush2.bf16.msra.mxu0 0
        %803 = vmatprep.subr.bf16.mxu0 0
        %804 = vmatpush2.bf16.msra.mxu0 0
        %805 = vmatprep.subr.bf16.mxu0 0
        %806 = vmatpush2.bf16.msra.mxu0 0
        %807 = vmatprep.subr.bf16.mxu0 0
        %808 = vmatpush2.bf16.msra.mxu0 0
        %809 = vmatprep.subr.bf16.mxu0 0
        %810 = vmatpush2.bf16.msra.mxu0 0
        %811 = vmatprep.subr.bf16.mxu0 0
        %812 = vmatpush2.bf16.msra.mxu0 0
        %813 = vmatprep.subr.bf16.mxu0 0
        %814 = vmatpush2.bf16.msra.mxu0 0
        %815 = vmatprep.mubr.bf16.mxu0 0
        %816 = vmatmul.mubr.bf16.gmra.mxu0 %v778
        %v817 = vpop.f32.mrf.mxu0
        %v818 = vadd.f32 0.0, %v817
        %v819 = vpop.f32.mrf.mxu0
        %v820 = vpop.f32.mrf.mxu0
        %v821 = vpop.f32.mrf.mxu0
        %822 = vdwg.mxu0
        %823 = vrot.lane.b32.xlu0 %v593, 112
        %v824 = vpop.permute.xlu0 %823
        %825 = vrot.lane.b32.xlu0 %v659, 112
        %v826 = vpop.permute.xlu0 %825
        %v828 = vsel %vm595, %v824, 0
        %v831 = vsel %vm595, %v826, 0
        %833 = vmatprep.subr.bf16.mxu0 0
        %834 = vmatpush1.bf16.xpose.msra.mxu0 0
        %835 = vmatprep.subr.bf16.mxu0 0
        %836 = vmatpush1.bf16.xpose.msra.mxu0 0
        %837 = vmatprep.subr.bf16.mxu0 0
        %838 = vmatpush1.bf16.xpose.msra.mxu0 0
        %839 = vmatprep.subr.bf16.mxu0 0
        %840 = vmatpush1.bf16.xpose.msra.mxu0 0
        %841 = vmatprep.subr.bf16.mxu0 0
        %842 = vmatpush1.bf16.xpose.msra.mxu0 0
        %843 = vmatprep.subr.bf16.mxu0 0
        %844 = vmatpush1.bf16.xpose.msra.mxu0 0
        %845 = vmatprep.subr.bf16.mxu0 0
        %846 = vmatpush1.bf16.xpose.msra.mxu0 0
        %847 = vmatprep.subr.bf16.mxu0 0
        %848 = vmatpush1.bf16.xpose.msra.mxu0 %v831
        %849 = vmatprep.subr.bf16.mxu0 0
        %850 = vmatpush2.bf16.xpose.msra.mxu0 0
        %851 = vmatprep.subr.bf16.mxu0 0
        %852 = vmatpush2.bf16.xpose.msra.mxu0 0
        %853 = vmatprep.subr.bf16.mxu0 0
        %854 = vmatpush2.bf16.xpose.msra.mxu0 0
        %855 = vmatprep.subr.bf16.mxu0 0
        %856 = vmatpush2.bf16.xpose.msra.mxu0 0
        %857 = vmatprep.subr.bf16.mxu0 0
        %858 = vmatpush2.bf16.xpose.msra.mxu0 0
        %859 = vmatprep.subr.bf16.mxu0 0
        %860 = vmatpush2.bf16.xpose.msra.mxu0 0
        %861 = vmatprep.subr.bf16.mxu0 0
        %862 = vmatpush2.bf16.xpose.msra.mxu0 0
        %863 = vmatprep.subr.bf16.mxu0 0
        %864 = vmatpush2.bf16.xpose.msra.mxu0 0
        %865 = vmatprep.mubr.bf16.mxu0 0
        %866 = vmatmul.mubr.bf16.gmra.mxu0 %v828
        %v867 = vpop.f32.mrf.mxu0
        %v868 = vadd.f32 0.0, %v867
        %v869 = vpop.f32.mrf.mxu0
        %v870 = vpop.f32.mrf.mxu0
        %v871 = vpop.f32.mrf.mxu0
        %872 = vdwg.mxu0
        %v873 = vsel %vm595, %v868, -inf
        %874 = vmax.xlane.f32.xlu0 %v873
        %v875 = vpop.xlane.xlu0 %874
        %v876 = vsub.f32 %v868, %v875
        %v877 = vmul.f32 %v876, 1.442695
        %v878 = vpow.pop %v877
        %v879 = vsel %vm595, %v878, 0.0
        %880 = vadd.xlane.f32.xlu0 %v879
        %v881 = vpop.xlane.xlu0 %880
        %v882 = vrcp.pop %v881
        %v883 = vmul.f32 %v881, %v882
        %v884 = vsub.f32 2.0, %v883
        %v885 = vmul.f32 %v882, %v884
        %v886 = vmul.f32 %v878, %v885
        %v887 = vpack.c.bf16 %v886, %v886
        %888 = vrot.lane.b32.xlu0 %v659, 80
        %v889 = vpop.permute.xlu0 %888
        %v891 = vsel %vm595, %v887, 0
        %v894 = vsel %vm665, %v889, 0
        %896 = vmatprep.subr.bf16.mxu0 0
        %897 = vmatpush1.bf16.msra.mxu0 0
        %898 = vmatprep.subr.bf16.mxu0 0
        %899 = vmatpush1.bf16.msra.mxu0 0
        %900 = vmatprep.subr.bf16.mxu0 0
        %901 = vmatpush1.bf16.msra.mxu0 0
        %902 = vmatprep.subr.bf16.mxu0 0
        %903 = vmatpush1.bf16.msra.mxu0 0
        %904 = vmatprep.subr.bf16.mxu0 0
        %905 = vmatpush1.bf16.msra.mxu0 0
        %906 = vmatprep.subr.bf16.mxu0 0
        %907 = vmatpush1.bf16.msra.mxu0 0
        %908 = vmatprep.subr.bf16.mxu0 0
        %909 = vmatpush1.bf16.msra.mxu0 0
        %910 = vmatprep.subr.bf16.mxu0 0
        %911 = vmatpush1.bf16.msra.mxu0 %v894
        %912 = vmatprep.subr.bf16.mxu0 0
        %913 = vmatpush2.bf16.msra.mxu0 0
        %914 = vmatprep.subr.bf16.mxu0 0
        %915 = vmatpush2.bf16.msra.mxu0 0
        %916 = vmatprep.subr.bf16.mxu0 0
        %917 = vmatpush2.bf16.msra.mxu0 0
        %918 = vmatprep.subr.bf16.mxu0 0
        %919 = vmatpush2.bf16.msra.mxu0 0
        %920 = vmatprep.subr.bf16.mxu0 0
        %921 = vmatpush2.bf16.msra.mxu0 0
        %922 = vmatprep.subr.bf16.mxu0 0
        %923 = vmatpush2.bf16.msra.mxu0 0
        %924 = vmatprep.subr.bf16.mxu0 0
        %925 = vmatpush2.bf16.msra.mxu0 0
        %926 = vmatprep.subr.bf16.mxu0 0
        %927 = vmatpush2.bf16.msra.mxu0 0
        %928 = vmatprep.mubr.bf16.mxu0 0
        %929 = vmatmul.mubr.bf16.gmra.mxu0 %v891
        %v930 = vpop.f32.mrf.mxu0
        %v931 = vadd.f32 0.0, %v930
        %v932 = vpop.f32.mrf.mxu0
        %v933 = vpop.f32.mrf.mxu0
        %v934 = vpop.f32.mrf.mxu0
        %935 = vdwg.mxu0
        %936 = vrot.lane.b32.xlu0 %v593, 104
        %v937 = vpop.permute.xlu0 %936
        %938 = vrot.lane.b32.xlu0 %v659, 104
        %v939 = vpop.permute.xlu0 %938
        %v941 = vsel %vm595, %v937, 0
        %v944 = vsel %vm595, %v939, 0
        %946 = vmatprep.subr.bf16.mxu0 0
        %947 = vmatpush1.bf16.xpose.msra.mxu0 0
        %948 = vmatprep.subr.bf16.mxu0 0
        %949 = vmatpush1.bf16.xpose.msra.mxu0 0
        %950 = vmatprep.subr.bf16.mxu0 0
        %951 = vmatpush1.bf16.xpose.msra.mxu0 0
        %952 = vmatprep.subr.bf16.mxu0 0
        %953 = vmatpush1.bf16.xpose.msra.mxu0 0
        %954 = vmatprep.subr.bf16.mxu0 0
        %955 = vmatpush1.bf16.xpose.msra.mxu0 0
        %956 = vmatprep.subr.bf16.mxu0 0
        %957 = vmatpush1.bf16.xpose.msra.mxu0 0
        %958 = vmatprep.subr.bf16.mxu0 0
        %959 = vmatpush1.bf16.xpose.msra.mxu0 0
        %960 = vmatprep.subr.bf16.mxu0 0
        %961 = vmatpush1.bf16.xpose.msra.mxu0 %v944
        %962 = vmatprep.subr.bf16.mxu0 0
        %963 = vmatpush2.bf16.xpose.msra.mxu0 0
        %964 = vmatprep.subr.bf16.mxu0 0
        %965 = vmatpush2.bf16.xpose.msra.mxu0 0
        %966 = vmatprep.subr.bf16.mxu0 0
        %967 = vmatpush2.bf16.xpose.msra.mxu0 0
        %968 = vmatprep.subr.bf16.mxu0 0
        %969 = vmatpush2.bf16.xpose.msra.mxu0 0
        %970 = vmatprep.subr.bf16.mxu0 0
        %971 = vmatpush2.bf16.xpose.msra.mxu0 0
        %972 = vmatprep.subr.bf16.mxu0 0
        %973 = vmatpush2.bf16.xpose.msra.mxu0 0
        %974 = vmatprep.subr.bf16.mxu0 0
        %975 = vmatpush2.bf16.xpose.msra.mxu0 0
        %976 = vmatprep.subr.bf16.mxu0 0
        %977 = vmatpush2.bf16.xpose.msra.mxu0 0
        %978 = vmatprep.mubr.bf16.mxu0 0
        %979 = vmatmul.mubr.bf16.gmra.mxu0 %v941
        %v980 = vpop.f32.mrf.mxu0
        %v981 = vadd.f32 0.0, %v980
        %v982 = vpop.f32.mrf.mxu0
        %v983 = vpop.f32.mrf.mxu0
        %v984 = vpop.f32.mrf.mxu0
        %985 = vdwg.mxu0
        %v986 = vsel %vm595, %v981, -inf
        %987 = vmax.xlane.f32.xlu0 %v986
        %v988 = vpop.xlane.xlu0 %987
        %v989 = vsub.f32 %v981, %v988
        %v990 = vmul.f32 %v989, 1.442695
        %v991 = vpow.pop %v990
        %v992 = vsel %vm595, %v991, 0.0
        %993 = vadd.xlane.f32.xlu0 %v992
        %v994 = vpop.xlane.xlu0 %993
        %v995 = vrcp.pop %v994
        %v996 = vmul.f32 %v994, %v995
        %v997 = vsub.f32 2.0, %v996
        %v998 = vmul.f32 %v995, %v997
        %v999 = vmul.f32 %v991, %v998
        %v1000 = vpack.c.bf16 %v999, %v999
        %1001 = vrot.lane.b32.xlu0 %v659, 72
        %v1002 = vpop.permute.xlu0 %1001
        %v1004 = vsel %vm595, %v1000, 0
        %v1007 = vsel %vm665, %v1002, 0
        %1009 = vmatprep.subr.bf16.mxu0 0
        %1010 = vmatpush1.bf16.msra.mxu0 0
        %1011 = vmatprep.subr.bf16.mxu0 0
        %1012 = vmatpush1.bf16.msra.mxu0 0
        %1013 = vmatprep.subr.bf16.mxu0 0
        %1014 = vmatpush1.bf16.msra.mxu0 0
        %1015 = vmatprep.subr.bf16.mxu0 0
        %1016 = vmatpush1.bf16.msra.mxu0 0
        %1017 = vmatprep.subr.bf16.mxu0 0
        %1018 = vmatpush1.bf16.msra.mxu0 0
        %1019 = vmatprep.subr.bf16.mxu0 0
        %1020 = vmatpush1.bf16.msra.mxu0 0
        %1021 = vmatprep.subr.bf16.mxu0 0
        %1022 = vmatpush1.bf16.msra.mxu0 0
        %1023 = vmatprep.subr.bf16.mxu0 0
        %1024 = vmatpush1.bf16.msra.mxu0 %v1007
        %1025 = vmatprep.subr.bf16.mxu0 0
        %1026 = vmatpush2.bf16.msra.mxu0 0
        %1027 = vmatprep.subr.bf16.mxu0 0
        %1028 = vmatpush2.bf16.msra.mxu0 0
        %1029 = vmatprep.subr.bf16.mxu0 0
        %1030 = vmatpush2.bf16.msra.mxu0 0
        %1031 = vmatprep.subr.bf16.mxu0 0
        %1032 = vmatpush2.bf16.msra.mxu0 0
        %1033 = vmatprep.subr.bf16.mxu0 0
        %1034 = vmatpush2.bf16.msra.mxu0 0
        %1035 = vmatprep.subr.bf16.mxu0 0
        %1036 = vmatpush2.bf16.msra.mxu0 0
        %1037 = vmatprep.subr.bf16.mxu0 0
        %1038 = vmatpush2.bf16.msra.mxu0 0
        %1039 = vmatprep.subr.bf16.mxu0 0
        %1040 = vmatpush2.bf16.msra.mxu0 0
        %1041 = vmatprep.mubr.bf16.mxu0 0
        %1042 = vmatmul.mubr.bf16.gmra.mxu0 %v1004
        %v1043 = vpop.f32.mrf.mxu0
        %v1044 = vadd.f32 0.0, %v1043
        %v1045 = vpop.f32.mrf.mxu0
        %v1046 = vpop.f32.mrf.mxu0
        %v1047 = vpop.f32.mrf.mxu0
        %1048 = vdwg.mxu0
        %1050 = vrot.lane.b32.xlu0 %v818, 8
        %v1051 = vpop.permute.xlu0 %1050
        %1054 = vrot.lane.b32.xlu0 %v931, 16
        %v1055 = vpop.permute.xlu0 %1054
        %1058 = vrot.lane.b32.xlu0 %v1044, 24
        %v1059 = vpop.permute.xlu0 %1058
        %v1061 = vsel %vm595, %v704, %v1051
        %vm1062 = vcmask 130048
        %v1063 = vsel %vm1062, %v1061, %v1055
        %vm1064 = vcmask 195584
        %v1065 = vsel %vm1064, %v1063, %v1059
        %v1066 = vpack.c.bf16 %v1065, %v1065
        %v1067 = vld [vmem:[#allocation6] sm:$0xf]
        %v1068 = vld [vmem:[#allocation6 + $0x4] sm:$0xf]
        %v1069 = vld [vmem:[#allocation6 + $0x8] sm:$0xf]
        %v1070 = vld [vmem:[#allocation6 + $0xc] sm:$0xf]
        %v1071 = vlaneseq
        %v1072 = vshrl.u32 %v1071, 7
        %v1073 = vsub.s32 1, %v1072
        %v1074 = vrot.slane %v522, %v1073
        %v1079 = vunpack.c.l.b16 %v1067
        %v1080 = vunpack.c.l.b16 %v1068
        %v1081 = vunpack.c.l.b16 %v1069
        %v1082 = vunpack.c.l.b16 %v1070
        %v1083 = vpack.c.b16 %v1080, %v1079
        %v1084 = vpack.c.b16 %v1082, %v1081
        %v1088 = vsel %vm549, %v1066, 0
        %1090 = vmatprep.subr.bf16.mxu0 0
        %1091 = vmatpush1.bf16.msra.mxu0 0
        %1092 = vmatprep.subr.bf16.mxu0 0
        %1093 = vmatpush1.bf16.msra.mxu0 0
        %1094 = vmatprep.subr.bf16.mxu0 0
        %1095 = vmatpush1.bf16.msra.mxu0 0
        %1096 = vmatprep.subr.bf16.mxu0 0
        %1097 = vmatpush1.bf16.msra.mxu0 0
        %1098 = vmatprep.subr.bf16.mxu0 0
        %1099 = vmatpush1.bf16.msra.mxu0 0
        %1100 = vmatprep.subr.bf16.mxu0 0
        %1101 = vmatpush1.bf16.msra.mxu0 0
        %1102 = vmatprep.subr.bf16.mxu0 0
        %1103 = vmatpush1.bf16.msra.mxu0 %v1084
        %1104 = vmatprep.subr.bf16.mxu0 0
        %1105 = vmatpush1.bf16.msra.mxu0 %v1083
        %1106 = vmatprep.subr.bf16.mxu0 0
        %1107 = vmatpush2.bf16.msra.mxu0 0
        %1108 = vmatprep.subr.bf16.mxu0 0
        %1109 = vmatpush2.bf16.msra.mxu0 0
        %1110 = vmatprep.subr.bf16.mxu0 0
        %1111 = vmatpush2.bf16.msra.mxu0 0
        %1112 = vmatprep.subr.bf16.mxu0 0
        %1113 = vmatpush2.bf16.msra.mxu0 0
        %1114 = vmatprep.subr.bf16.mxu0 0
        %1115 = vmatpush2.bf16.msra.mxu0 0
        %1116 = vmatprep.subr.bf16.mxu0 0
        %1117 = vmatpush2.bf16.msra.mxu0 0
        %1118 = vmatprep.subr.bf16.mxu0 0
        %1119 = vmatpush2.bf16.msra.mxu0 0
        %1120 = vmatprep.subr.bf16.mxu0 0
        %1121 = vmatpush2.bf16.msra.mxu0 0
        %1122 = vmatprep.mubr.bf16.mxu0 0
        %1123 = vmatmul.mubr.bf16.gmra.mxu0 %v1088
        %v1124 = vpop.f32.mrf.mxu0
        %v1125 = vadd.f32 %v1074, %v1124
        %v1126 = vpop.f32.mrf.mxu0
        %v1127 = vpop.f32.mrf.mxu0
        %v1128 = vpop.f32.mrf.mxu0
        %1129 = vdwg.mxu0
        %v1130 = vld [vmem:[%s445] sm:$0xff]
        %v1131 = vadd.f32 %v1130, %v1125
        %v1132 = vsel %vm549, %v1131, 0.0
        %1133 = vadd.xlane.f32.xlu0 %v1132
        %v1134 = vpop.xlane.xlu0 %1133
        %v1135 = vrcp.pop 32.0
        %v1136 = vmul.f32 %v1134, %v1135
        %v1137 = vsub.f32 %v1131, %v1136
        %v1138 = vmul.f32 %v1137, %v1137
        %v1139 = vsel %vm549, %v1138, 0.0
        %1140 = vadd.xlane.f32.xlu0 %v1139
        %v1141 = vpop.xlane.xlu0 %1140
        %v1142 = vmul.f32 %v1141, %v1135
        %v1143 = vadd.f32 %v1142, 1e-05
        %v1144 = vrsqrt.pop %v1143
        %v1145 = vmul.f32 %v1137, %v1144
        %v1146 = vlaneseq
        %v1147 = vshrl.u32 %v1146, 7
        %v1148 = vsub.s32 3, %v1147
        %v1149 = vrot.slane %v522, %v1148
        %v1150 = vmul.f32 %v1145, %v1149
        %v1151 = vlaneseq
        %v1152 = vshrl.u32 %v1151, 7
        %v1153 = vsub.s32 4, %v1152
        %v1154 = vrot.slane %v522, %v1153
        %v1155 = vadd.f32 %v1150, %v1154
        %v1156 = vpack.c.bf16 %v1155, %v1155
        %v1157 = vld [vmem:[#allocation8] sm:$0xf]
        %v1158 = vld [vmem:[#allocation8 + $0x4] sm:$0xf]
        %v1159 = vld [vmem:[#allocation8 + $0x8] sm:$0xf]
        %v1160 = vld [vmem:[#allocation8 + $0xc] sm:$0xf]
        %v1161 = vld [vmem:[%s8] sm:$0x1]
        %v1163 = vlaneseq
        %v1164 = vshrl.u32 %v1163, 7
        %v1165 = vsub.s32 0, %v1164
        %v1166 = vrot.slane %v1161, %v1165
        %v1172 = vunpack.c.l.b16 %v1157
        %v1173 = vunpack.c.l.b16 %v1158
        %v1174 = vunpack.c.l.b16 %v1159
        %v1175 = vunpack.c.l.b16 %v1160
        %v1176 = vpack.c.b16 %v1173, %v1172
        %v1177 = vpack.c.b16 %v1175, %v1174
        %v1181 = vsel %vm549, %v1156, 0
        %1183 = vmatprep.subr.bf16.mxu0 0
        %1184 = vmatpush1.bf16.msra.mxu0 0
        %1185 = vmatprep.subr.bf16.mxu0 0
        %1186 = vmatpush1.bf16.msra.mxu0 0
        %1187 = vmatprep.subr.bf16.mxu0 0
        %1188 = vmatpush1.bf16.msra.mxu0 0
        %1189 = vmatprep.subr.bf16.mxu0 0
        %1190 = vmatpush1.bf16.msra.mxu0 0
        %1191 = vmatprep.subr.bf16.mxu0 0
        %1192 = vmatpush1.bf16.msra.mxu0 0
        %1193 = vmatprep.subr.bf16.mxu0 0
        %1194 = vmatpush1.bf16.msra.mxu0 0
        %1195 = vmatprep.subr.bf16.mxu0 0
        %1196 = vmatpush1.bf16.msra.mxu0 %v1177
        %1197 = vmatprep.subr.bf16.mxu0 0
        %1198 = vmatpush1.bf16.msra.mxu0 %v1176
        %1199 = vmatprep.subr.bf16.mxu0 0
        %1200 = vmatpush2.bf16.msra.mxu0 0
        %1201 = vmatprep.subr.bf16.mxu0 0
        %1202 = vmatpush2.bf16.msra.mxu0 0
        %1203 = vmatprep.subr.bf16.mxu0 0
        %1204 = vmatpush2.bf16.msra.mxu0 0
        %1205 = vmatprep.subr.bf16.mxu0 0
        %1206 = vmatpush2.bf16.msra.mxu0 0
        %1207 = vmatprep.subr.bf16.mxu0 0
        %1208 = vmatpush2.bf16.msra.mxu0 0
        %1209 = vmatprep.subr.bf16.mxu0 0
        %1210 = vmatpush2.bf16.msra.mxu0 0
        %1211 = vmatprep.subr.bf16.mxu0 0
        %1212 = vmatpush2.bf16.msra.mxu0 0
        %1213 = vmatprep.subr.bf16.mxu0 0
        %1214 = vmatpush2.bf16.msra.mxu0 0
        %1215 = vmatprep.mubr.bf16.mxu0 0
        %1216 = vmatmul.mubr.bf16.gmra.mxu0 %v1181
        %v1217 = vpop.f32.mrf.mxu0
        %v1218 = vadd.f32 %v1166, %v1217
        %v1219 = vpop.f32.mrf.mxu0
        %v1220 = vpop.f32.mrf.mxu0
        %v1221 = vpop.f32.mrf.mxu0
        %1222 = vdwg.mxu0
        %v1223 = vmax.f32 %v1218, 0.0
        %v1224 = vpack.c.bf16 %v1223, %v1223
        %v1225 = vld [vmem:[%s6] sm:$0xf]
        %v1226 = vld [vmem:[%s6 + $0x4] sm:$0xf]
        %v1227 = vld [vmem:[%s6 + $0x8] sm:$0xf]
        %v1228 = vld [vmem:[%s6 + $0xc] sm:$0xf]
        %v1229 = vld [vmem:[%s6 + $0x10] sm:$0xf]
        %v1230 = vld [vmem:[%s6 + $0x14] sm:$0xf]
        %v1231 = vld [vmem:[%s6 + $0x18] sm:$0xf]
        %v1232 = vld [vmem:[%s6 + $0x1c] sm:$0xf]
        %v1233 = vlaneseq
        %v1234 = vshrl.u32 %v1233, 7
        %v1235 = vsub.s32 2, %v1234
        %v1236 = vrot.slane %v522, %v1235
        %v1245 = vunpack.c.l.b16 %v1225
        %v1246 = vunpack.c.l.b16 %v1226
        %v1247 = vunpack.c.l.b16 %v1227
        %v1248 = vunpack.c.l.b16 %v1228
        %v1249 = vunpack.c.l.b16 %v1229
        %v1250 = vunpack.c.l.b16 %v1230
        %v1251 = vunpack.c.l.b16 %v1231
        %v1252 = vunpack.c.l.b16 %v1232
        %v1253 = vpack.c.b16 %v1246, %v1245
        %v1254 = vpack.c.b16 %v1248, %v1247
        %v1255 = vpack.c.b16 %v1250, %v1249
        %v1256 = vpack.c.b16 %v1252, %v1251
        %vm1261 = vcmask 523264
        %v1263 = vsel %vm1261, %v1224, 0
        %1265 = vmatprep.subr.bf16.mxu0 0
        %1266 = vmatpush1.bf16.msra.mxu0 0
        %1267 = vmatprep.subr.bf16.mxu0 0
        %1268 = vmatpush1.bf16.msra.mxu0 0
        %1269 = vmatprep.subr.bf16.mxu0 0
        %1270 = vmatpush1.bf16.msra.mxu0 0
        %1271 = vmatprep.subr.bf16.mxu0 0
        %1272 = vmatpush1.bf16.msra.mxu0 0
        %1273 = vmatprep.subr.bf16.mxu0 0
        %1274 = vmatpush1.bf16.msra.mxu0 %v1256
        %1275 = vmatprep.subr.bf16.mxu0 0
        %1276 = vmatpush1.bf16.msra.mxu0 %v1255
        %1277 = vmatprep.subr.bf16.mxu0 0
        %1278 = vmatpush1.bf16.msra.mxu0 %v1254
        %1279 = vmatprep.subr.bf16.mxu0 0
        %1280 = vmatpush1.bf16.msra.mxu0 %v1253
        %1281 = vmatprep.subr.bf16.mxu0 0
        %1282 = vmatpush2.bf16.msra.mxu0 0
        %1283 = vmatprep.subr.bf16.mxu0 0
        %1284 = vmatpush2.bf16.msra.mxu0 0
        %1285 = vmatprep.subr.bf16.mxu0 0
        %1286 = vmatpush2.bf16.msra.mxu0 0
        %1287 = vmatprep.subr.bf16.mxu0 0
        %1288 = vmatpush2.bf16.msra.mxu0 0
        %1289 = vmatprep.subr.bf16.mxu0 0
        %1290 = vmatpush2.bf16.msra.mxu0 0
        %1291 = vmatprep.subr.bf16.mxu0 0
        %1292 = vmatpush2.bf16.msra.mxu0 0
        %1293 = vmatprep.subr.bf16.mxu0 0
        %1294 = vmatpush2.bf16.msra.mxu0 0
        %1295 = vmatprep.subr.bf16.mxu0 0
        %1296 = vmatpush2.bf16.msra.mxu0 0
        %1297 = vmatprep.mubr.bf16.mxu0 0
        %1298 = vmatmul.mubr.bf16.gmra.mxu0 %v1263
        %v1299 = vpop.f32.mrf.mxu0
        %v1300 = vadd.f32 %v1236, %v1299
        %v1301 = vpop.f32.mrf.mxu0
        %v1302 = vpop.f32.mrf.mxu0
        %v1303 = vpop.f32.mrf.mxu0
        %1304 = vdwg.mxu0
        %v1305 = vadd.f32 %v1155, %v1300
        %v1306 = vsel %vm549, %v1305, 0.0
        %1307 = vadd.xlane.f32.xlu0 %v1306
        %v1308 = vpop.xlane.xlu0 %1307
        %v1309 = vmul.f32 %v1308, %v1135
        %v1310 = vsub.f32 %v1305, %v1309
        %v1311 = vmul.f32 %v1310, %v1310
        %v1312 = vsel %vm549, %v1311, 0.0
        %1313 = vadd.xlane.f32.xlu0 %v1312
        %v1314 = vpop.xlane.xlu0 %1313
        %v1315 = vmul.f32 %v1314, %v1135
        %v1316 = vadd.f32 %v1315, 1e-05
        %v1317 = vrsqrt.pop %v1316
        %v1318 = vmul.f32 %v1310, %v1317
        %v1319 = vlaneseq
        %v1320 = vshrl.u32 %v1319, 7
        %v1321 = vsub.s32 5, %v1320
        %v1322 = vrot.slane %v522, %v1321
        %v1323 = vmul.f32 %v1318, %v1322
        %v1324 = vlaneseq
        %v1325 = vshrl.u32 %v1324, 7
        %v1326 = vsub.s32 6, %v1325
        %v1327 = vrot.slane %v522, %v1326
        %v1328 = vadd.f32 %v1323, %v1327
        %1329 = vst.msk [vmem:[%s438] sm:$0xff] %vm549, %v1328
        %s1330 = sand.u32 %s272, 1
        %s1331 = scalar_lea.sflag [#allocation5], %s1330
        %s1332 = sand.u32 %s272, 1
        %s1333 = smul.addr %s1332, 8
        %s1334 = scalar_lea.vmem [#allocation9], %s1333
        // Predicated region
        $region77: #{tpu_custom_call.1} parent=59 // pred_check
          %p1335 = pneg %p282
        $region78: #{tpu_custom_call.1} parent=59 // pred_check_branch
          %1337 = sbr.rel (%p1335) target = $region80
        $region79: #{tpu_custom_call.1} parent=59 // pred_region
          %s1339 = ssub.s32 128, 128
          %1340 = vsyncadd %s1331, %s1339
          %s1341 = sadd.s32 %s33, %s32
          %s1342 = smul.addr %s1341, 128
          %s1343 = scalar_lea.hbm %s10, %s1342
          %s1345 = sshll.u32 %s1334, 4
          %s1346 = int_to_ptr.vmem [resolvable:$true] %s1345
          %1348 = dma.vmem_to_hbm [thread:$0]  %s1346, 128, %s1343, %s1331
        $region80: #{tpu_custom_call.1} parent=59 // pred_fallthru
          _
      $region60: #{tpu_custom_call.1} parent=5 // pred_fallthru
        _
      %p1349 = scmp.le.s32.totalorder 2, %s23
      // Predicated region
      $region81: #{tpu_custom_call.1} parent=5 // pred_check
        %p1350 = pneg %p1349
      $region82: #{tpu_custom_call.1} parent=5 // pred_check_branch
        %1352 = sbr.rel (%p1350) target = $region84
      $region83: #{tpu_custom_call.1} parent=5 // pred_region
        %s1353 = ssub.s32 %s23, 2
        // Predicated region
        $region85: #{tpu_custom_call.1} parent=83 // pred_check
          %p1354 = pneg %p288
        $region86: #{tpu_custom_call.1} parent=83 // pred_check_branch
          %1356 = sbr.rel (%p1354) target = $region88
        $region87: #{tpu_custom_call.1} parent=83 // pred_region
          %s1357 = sand.u32 %s273, 1
          %s1358 = scalar_lea.sflag [#allocation5], %s1357
          %s1359 = sand.u32 %s273, 1
          %s1360 = smul.addr %s1359, 8
          %s1361 = scalar_lea.vmem [#allocation9], %s1360
          %1362 = dma.done %s1358, 128
        $region88: #{tpu_custom_call.1} parent=83 // pred_fallthru
          _
      $region84: #{tpu_custom_call.1} parent=5 // pred_fallthru
        _
    $region6: #{tpu_custom_call.1} parent=1 // loop_footer
      %s27 = sadd.s32 1, %s23
    $region7: #{tpu_custom_call.1} parent=1 // loop_footer_branch
      %22 = sbr.rel target = $region3
    $region8: #{tpu_custom_call.1} parent=1 // loop_exit
      _
    %1363 = vsyncpa [#allocation4], 1
    %s1364 = scalar_lea.sflag [#allocation4], 1
    %1365 = vsyncpa %s1364, 1
    %1366 = vsyncpa [#allocation7], 1
    %1367 = vsyncpa [#allocation5], 1
    %s1368 = scalar_lea.sflag [#allocation5], 1
    %1369 = vsyncpa %s1368, 1

</llo_original>
